<compile_context>
chip_gen: v7x
topology: tpu7x:2x2x1
jax: 0.10.0
libtpu: 0.0.40
codegen_flags: <defaults>
</compile_context>

<pallas_src>
import numpy as np
import jax
import jax.numpy as jnp
from jax.experimental import pallas as pl
from jax.experimental.pallas import tpu as pltpu


def _nbytes(a):
    return int(np.prod(a.shape)) * jnp.dtype(a.dtype).itemsize


# ---------------------------------------------------------------------------
# Kernel
# ---------------------------------------------------------------------------
def _make_kernel(num_bands, n_pre, dim_inputs, compute_dtype):
    """Fused per-row-tile kernel; band loop unrolled in Python (static slices).

    Ref order: x, [w, b] * n_pre, W_a, b_a, W_g, b_g, out
      x    : (tm, num_bands, dim)        input dtype (cast in-kernel)
      w    : (num_bands, d_in, d_out)    compute dtype
      b    : (num_bands, 1, d_out)       f32
      W_a/g: (num_bands, d_last, d_max)  compute dtype (zero-padded to d_max,
                                         sliced back to exact width per band)
      b_a/g: (num_bands, 1, d_max)       f32
      out  : (tm, sum(dim_inputs))       out dtype (concatenated layout)
    """
    offsets = [0]
    for d in dim_inputs:
        offsets.append(offsets[-1] + int(d))

    def kernel(x_ref, *refs):
        o_ref = refs[-1]
        w_refs = refs[:-1]
        wa_ref, ba_ref, wg_ref, bg_ref = w_refs[2 * n_pre:2 * n_pre + 4]

        for band in range(num_bands):                 # static unroll
            h = x_ref[:, band, :].astype(compute_dtype)          # (tm, dim)
            for li in range(n_pre):                   # Linear + Tanh layers
                w = w_refs[2 * li][band]              # (d_in, d_out)
                b = w_refs[2 * li + 1][band]          # (1, d_out) f32
                h = jnp.dot(h, w, preferred_element_type=jnp.float32) + b
                h = jnp.tanh(h).astype(compute_dtype)

            d_b = int(dim_inputs[band])
            wa = wa_ref[band, :, :d_b]                # exact width, no padding
            ba = ba_ref[band, :, :d_b]
            wg = wg_ref[band, :, :d_b]
            bg = bg_ref[band, :, :d_b]
            a = jnp.dot(h, wa, preferred_element_type=jnp.float32) + ba
            g = jnp.dot(h, wg, preferred_element_type=jnp.float32) + bg
            off = offsets[band]
            # Direct store into the concatenated layout (static column slice).
            o_ref[:, off:off + d_b] = (a * jax.nn.sigmoid(g)).astype(o_ref.dtype)

    return kernel


# ---------------------------------------------------------------------------
# Parameter packing (per-band lists -> band-stacked, GLU-split)
# ---------------------------------------------------------------------------
def pack_params(params, compute_dtype=jnp.bfloat16):
    """params: list (per band) of {"layers": [(W (d_in,d_out), b (d_out,)),...],
    "dim_in": int}.  All bands share dim / hidden widths (as in the module)."""
    depth = len(params[0]["layers"])
    dim_inputs = tuple(int(p["dim_in"]) for p in params)
    d_max = max(dim_inputs)               # only for stacking; sliced back in-kernel

    # Layers 0 .. depth-2 (Linear + Tanh), identical shapes across bands.
    pre_ws, pre_bs = [], []
    for li in range(depth - 1):
        pre_ws.append(jnp.stack([p["layers"][li][0] for p in params]
                                ).astype(compute_dtype))
        pre_bs.append(jnp.stack([p["layers"][li][1][None, :] for p in params]
                                ).astype(jnp.float32))

    # Last layer: split (d_last, 2*dim_in) into GLU halves; zero-pad only to
    # d_max so all bands stack into one array (padded columns never computed).
    wa_l, ba_l, wg_l, bg_l = [], [], [], []
    for p in params:
        w, b = p["layers"][-1]
        d = int(p["dim_in"])
        pad = d_max - d
        wa_l.append(jnp.pad(w[:, :d], ((0, 0), (0, pad))))
        wg_l.append(jnp.pad(w[:, d:], ((0, 0), (0, pad))))
        ba_l.append(jnp.pad(b[:d], (0, pad))[None, :])
        bg_l.append(jnp.pad(b[d:], (0, pad))[None, :])

    return {
        "dim_inputs": dim_inputs,
        "depth": depth,
        "compute_dtype": compute_dtype,
        "pre_ws": pre_ws,
        "pre_bs": pre_bs,
        "wa": jnp.stack(wa_l).astype(compute_dtype),
        "ba": jnp.stack(ba_l).astype(jnp.float32),
        "wg": jnp.stack(wg_l).astype(compute_dtype),
        "bg": jnp.stack(bg_l).astype(jnp.float32),
    }


# ---------------------------------------------------------------------------
# Forward
# ---------------------------------------------------------------------------
def mask_estimator_forward(x, packed, *, row_tile=1024, out_dtype=None):
    """x: (B, T, num_bands, dim) float32.  Returns (B, T, sum(dim_inputs)).

    row_tile: rows (B*T) per grid step; sweep ~512-4096 per TPU generation
    once vmem_limit_bytes is set (v5e smaller, v6e/v7x larger).
    """
    b_sz, t_sz, num_bands, dim = x.shape
    dim_inputs = packed["dim_inputs"]
    assert num_bands == len(dim_inputs)
    d_total = int(sum(dim_inputs))
    n_pre = packed["depth"] - 1
    compute_dtype = packed["compute_dtype"]
    if out_dtype is None:   # bf16 output by default when computing in bf16
        out_dtype = jnp.bfloat16 if compute_dtype == jnp.bfloat16 else jnp.float32

    n_rows = b_sz * t_sz
    # Free reshape only -- NO transpose / cast HBM pass over x.
    x2 = x.reshape(n_rows, num_bands, dim)

    if n_rows <= row_tile:
        tm = n_rows                       # full extent: always layout-legal
    else:
        assert row_tile % 8 == 0, "row_tile must be a multiple of 8"
        tm = row_tile
    n_row_tiles = pl.cdiv(n_rows, tm)
    grid = (n_row_tiles,)                 # rows only => balanced TC sharding

    operands = [x2]
    in_specs = [pl.BlockSpec((tm, num_bands, dim), lambda i: (i, 0, 0))]

    weight_arrays = []
    for w, bias in zip(packed["pre_ws"], packed["pre_bs"]):
        weight_arrays += [w, bias]
    weight_arrays += [packed["wa"], packed["ba"], packed["wg"], packed["bg"]]
    for arr in weight_arrays:
        operands.append(arr)
        # Constant block index => DMA'd once, VMEM-resident across the grid.
        in_specs.append(pl.BlockSpec(arr.shape, lambda i: (0, 0, 0)))

    out_shape = jax.ShapeDtypeStruct((n_rows, d_total), out_dtype)
    out_specs = pl.BlockSpec((tm, d_total), lambda i: (i, 0))

    # --- explicit VMEM budget (v5e default scoped VMEM is only 16 MiB) ------
    d_hidden = packed["pre_ws"][0].shape[2] if packed["pre_ws"] else dim
    x_blk = tm * num_bands * dim * jnp.dtype(x2.dtype).itemsize
    o_blk = tm * d_total * jnp.dtype(out_dtype).itemsize
    w_tot = sum(_nbytes(a) for a in weight_arrays)
    interm = 4 * tm * max(int(d_hidden), dim) * 4       # slack for live f32 h
    est = 2 * x_blk + 2 * o_blk + 2 * w_tot + interm
    # Headroom under v7x's 64 MiB physical VMEM; v5e/v6e have 128 MiB.
    vmem_limit = int(min(56 * 2**20, max(32 * 2**20, 2 * est)))

    # --- advisory cost estimate ---------------------------------------------
    d_last = packed["wa"].shape[1]
    pre_mac = sum(int(w.shape[1]) * int(w.shape[2]) for w in packed["pre_ws"])
    flops = 2 * n_rows * (num_bands * pre_mac + 2 * int(d_last) * d_total)
    transcendentals = n_rows * (
        num_bands * sum(int(w.shape[2]) for w in packed["pre_ws"]) + d_total)
    bytes_accessed = (_nbytes(x2) + w_tot
                      + n_rows * d_total * jnp.dtype(out_dtype).itemsize)

    out = pl.pallas_call(
        _make_kernel(num_bands, n_pre, dim_inputs, compute_dtype),
        out_shape=out_shape,
        grid=grid,
        in_specs=in_specs,
        out_specs=out_specs,
        compiler_params=pltpu.CompilerParams(
            dimension_semantics=("parallel",),
            vmem_limit_bytes=vmem_limit),
        cost_estimate=pl.CostEstimate(
            flops=int(flops),
            transcendentals=int(transcendentals),
            bytes_accessed=int(bytes_accessed)),
    )(*operands)

    # Already in concatenated layout; this reshape is free (no HBM pass).
    return out.reshape(b_sz, t_sz, d_total)


# ---------------------------------------------------------------------------
# Parameter init + pure-JAX reference
# ---------------------------------------------------------------------------
def init_params(key, dim, dim_inputs, depth, mlp_expansion_factor=4):
    """Deterministic synthetic parameters matching the module's shapes.
    W stored (in, out): y = x @ W + b  (== PyTorch x @ W.T with W (out, in))."""
    dim_hidden = dim * mlp_expansion_factor
    params = []
    for dim_in in dim_inputs:
        dims = (dim,) + (dim_hidden,) * (depth - 1) + (dim_in * 2,)
        layers = []
        for d_in, d_out in zip(dims[:-1], dims[1:]):
            key, kw, kb = jax.random.split(key, 3)
            scale = 1.0 / np.sqrt(d_in)
            w = jax.random.uniform(kw, (d_in, d_out), jnp.float32, -scale, scale)
            b = jax.random.uniform(kb, (d_out,), jnp.float32, -scale, scale)
            layers.append((w, b))
        params.append({"layers": layers, "dim_in": dim_in})
    return params


def reference_forward(x, params):
    """Pure-JAX f32 reference for correctness checking."""
    outs = []
    for band, p in enumerate(params):
        h = x[..., band, :]
        layers = p["layers"]
        for li, (w, b) in enumerate(layers):
            h = h @ w + b
            if li < len(layers) - 1:
                h = jnp.tanh(h)
        d = p["dim_in"]
        outs.append(h[..., :d] * jax.nn.sigmoid(h[..., d:]))
    return jnp.concatenate(outs, axis=-1)


if __name__ == "__main__":
    # Small, module-consistent shapes.
    batch, seq = 2, 8
    dim = 32
    depth = 2
    mlp_expansion_factor = 4
    dim_inputs = (16, 24, 8)            # heterogeneous per-band widths
    num_bands = len(dim_inputs)

    key = jax.random.PRNGKey(0)
    key, kx = jax.random.split(key)
    x = jax.random.normal(kx, (batch, seq, num_bands, dim), jnp.float32)
    params = init_params(key, dim, dim_inputs, depth, mlp_expansion_factor)

    ref = reference_forward(x, params)

    # 1) f32 compute + f32 output: tight check against the pure-JAX reference.
    packed_f32 = pack_params(params, compute_dtype=jnp.float32)
    out_f32 = jax.block_until_ready(
        mask_estimator_forward(x, packed_f32, row_tile=1024,
                               out_dtype=jnp.float32))
    assert out_f32.shape == (batch, seq, sum(dim_inputs)), out_f32.shape
    np.testing.assert_allclose(np.asarray(out_f32), np.asarray(ref),
                               rtol=1e-5, atol=1e-5)

    # 2) bf16 matmuls + bf16 output (production default): looser tolerance.
    packed_bf16 = pack_params(params, compute_dtype=jnp.bfloat16)
    out_bf16 = jax.block_until_ready(
        mask_estimator_forward(x, packed_bf16, row_tile=1024))
    assert out_bf16.shape == (batch, seq, sum(dim_inputs)), out_bf16.shape
    assert out_bf16.dtype == jnp.bfloat16
    np.testing.assert_allclose(np.asarray(out_bf16.astype(jnp.float32)),
                               np.asarray(ref), rtol=4e-2, atol=4e-2)

    print("KERNEL_OK")
</pallas_src>

<mosaic_0001>
module attributes {stable_mosaic.version = 11 : i64} {
  func.func @kernel(%arg0: i32, %arg1: memref<16x3x32xf32, #tpu.memory_space<vmem>>, %arg2: memref<3x32x128xf32, #tpu.memory_space<vmem>>, %arg3: memref<3x1x128xf32, #tpu.memory_space<vmem>>, %arg4: memref<3x128x24xf32, #tpu.memory_space<vmem>>, %arg5: memref<3x1x24xf32, #tpu.memory_space<vmem>>, %arg6: memref<3x128x24xf32, #tpu.memory_space<vmem>>, %arg7: memref<3x1x24xf32, #tpu.memory_space<vmem>>, %arg8: memref<16x48xf32, #tpu.memory_space<vmem>>) attributes {dimension_semantics = [#tpu.dimension_semantics<parallel>], iteration_bounds = array<i64: 1>, scalar_prefetch = 0 : i64, scratch_operands = 0 : i64, tpu.core_type = #tpu.core_type<tc>, window_params = [{transform_indices = @transform_0, window_bounds = array<i64: 16, 3, 32>}, {pipeline_mode = #tpu.pipeline_mode<synchronous>, transform_indices = @transform_1, window_bounds = array<i64: 3, 32, 128>}, {pipeline_mode = #tpu.pipeline_mode<synchronous>, transform_indices = @transform_2, window_bounds = array<i64: 3, 1, 128>}, {pipeline_mode = #tpu.pipeline_mode<synchronous>, transform_indices = @transform_3, window_bounds = array<i64: 3, 128, 24>}, {pipeline_mode = #tpu.pipeline_mode<synchronous>, transform_indices = @transform_4, window_bounds = array<i64: 3, 1, 24>}, {pipeline_mode = #tpu.pipeline_mode<synchronous>, transform_indices = @transform_5, window_bounds = array<i64: 3, 128, 24>}, {pipeline_mode = #tpu.pipeline_mode<synchronous>, transform_indices = @transform_6, window_bounds = array<i64: 3, 1, 24>}, {transform_indices = @transform_7, window_bounds = array<i64: 16, 48>}]} {
    %c0 = arith.constant 0 : index
    %c0_0 = arith.constant 0 : index
    %c0_1 = arith.constant 0 : index
    %0 = vector.load %arg1[%c0, %c0_0, %c0_1] : memref<16x3x32xf32, #tpu.memory_space<vmem>>, vector<16x1x32xf32>
    %1 = vector.shape_cast %0 : vector<16x1x32xf32> to vector<16x32xf32>
    %c0_2 = arith.constant 0 : index
    %c0_3 = arith.constant 0 : index
    %c0_4 = arith.constant 0 : index
    %2 = vector.load %arg2[%c0_2, %c0_3, %c0_4] : memref<3x32x128xf32, #tpu.memory_space<vmem>>, vector<1x32x128xf32>
    %3 = vector.shape_cast %2 : vector<1x32x128xf32> to vector<32x128xf32>
    %c0_5 = arith.constant 0 : index
    %c0_6 = arith.constant 0 : index
    %c0_7 = arith.constant 0 : index
    %4 = vector.load %arg3[%c0_5, %c0_6, %c0_7] : memref<3x1x128xf32, #tpu.memory_space<vmem>>, vector<1x1x128xf32>
    %5 = vector.shape_cast %4 : vector<1x1x128xf32> to vector<1x128xf32>
    %cst = arith.constant dense<0.000000e+00> : vector<16x128xf32>
    %6 = tpu.matmul %1, %3, %cst {dimension_numbers = #tpu.dot_dimension_numbers<[1], [0], [0], [1], [0, 0, 1, 1], [], []>} : vector<16x32xf32>, vector<32x128xf32>, vector<16x128xf32> -> vector<16x128xf32>
    %7 = vector.broadcast %5 : vector<1x128xf32> to vector<16x128xf32>
    %8 = arith.addf %6, %7 : vector<16x128xf32>
    %9 = math.tanh %8 : vector<16x128xf32>
    %c0_8 = arith.constant 0 : index
    %c0_9 = arith.constant 0 : index
    %c0_10 = arith.constant 0 : index
    %10 = vector.load %arg4[%c0_8, %c0_9, %c0_10] : memref<3x128x24xf32, #tpu.memory_space<vmem>>, vector<1x128x16xf32>
    %11 = vector.shape_cast %10 : vector<1x128x16xf32> to vector<128x16xf32>
    %c0_11 = arith.constant 0 : index
    %c0_12 = arith.constant 0 : index
    %c0_13 = arith.constant 0 : index
    %12 = vector.load %arg5[%c0_11, %c0_12, %c0_13] : memref<3x1x24xf32, #tpu.memory_space<vmem>>, vector<1x1x16xf32>
    %13 = vector.shape_cast %12 : vector<1x1x16xf32> to vector<1x16xf32>
    %c0_14 = arith.constant 0 : index
    %c0_15 = arith.constant 0 : index
    %c0_16 = arith.constant 0 : index
    %14 = vector.load %arg6[%c0_14, %c0_15, %c0_16] : memref<3x128x24xf32, #tpu.memory_space<vmem>>, vector<1x128x16xf32>
    %15 = vector.shape_cast %14 : vector<1x128x16xf32> to vector<128x16xf32>
    %c0_17 = arith.constant 0 : index
    %c0_18 = arith.constant 0 : index
    %c0_19 = arith.constant 0 : index
    %16 = vector.load %arg7[%c0_17, %c0_18, %c0_19] : memref<3x1x24xf32, #tpu.memory_space<vmem>>, vector<1x1x16xf32>
    %17 = vector.shape_cast %16 : vector<1x1x16xf32> to vector<1x16xf32>
    %cst_20 = arith.constant dense<0.000000e+00> : vector<16x16xf32>
    %18 = tpu.matmul %9, %11, %cst_20 {dimension_numbers = #tpu.dot_dimension_numbers<[1], [0], [0], [1], [0, 0, 1, 1], [], []>} : vector<16x128xf32>, vector<128x16xf32>, vector<16x16xf32> -> vector<16x16xf32>
    %19 = vector.broadcast %13 : vector<1x16xf32> to vector<16x16xf32>
    %20 = arith.addf %18, %19 : vector<16x16xf32>
    %cst_21 = arith.constant dense<0.000000e+00> : vector<16x16xf32>
    %21 = tpu.matmul %9, %15, %cst_21 {dimension_numbers = #tpu.dot_dimension_numbers<[1], [0], [0], [1], [0, 0, 1, 1], [], []>} : vector<16x128xf32>, vector<128x16xf32>, vector<16x16xf32> -> vector<16x16xf32>
    %22 = vector.broadcast %17 : vector<1x16xf32> to vector<16x16xf32>
    %23 = arith.addf %21, %22 : vector<16x16xf32>
    %24 = arith.negf %23 : vector<16x16xf32>
    %25 = math.exp %24 : vector<16x16xf32>
    %cst_22 = arith.constant 1.000000e+00 : f32
    %26 = vector.broadcast %cst_22 : f32 to vector<16x16xf32>
    %27 = arith.addf %26, %25 : vector<16x16xf32>
    %28 = arith.divf %26, %27 : vector<16x16xf32>
    %29 = arith.mulf %20, %28 : vector<16x16xf32>
    %c0_23 = arith.constant 0 : index
    %c0_24 = arith.constant 0 : index
    %30 = vector.load %arg8[%c0_23, %c0_24] : memref<16x48xf32, #tpu.memory_space<vmem>>, vector<16x16xf32>
    tpu.vector_store %arg8[%c0_23, %c0_24], %29 {strides = array<i32>} : memref<16x48xf32, #tpu.memory_space<vmem>>, vector<16x16xf32>,
    %c0_25 = arith.constant 0 : index
    %c1 = arith.constant 1 : index
    %c0_26 = arith.constant 0 : index
    %31 = vector.load %arg1[%c0_25, %c1, %c0_26] : memref<16x3x32xf32, #tpu.memory_space<vmem>>, vector<16x1x32xf32>
    %32 = vector.shape_cast %31 : vector<16x1x32xf32> to vector<16x32xf32>
    %c1_27 = arith.constant 1 : index
    %c0_28 = arith.constant 0 : index
    %c0_29 = arith.constant 0 : index
    %33 = vector.load %arg2[%c1_27, %c0_28, %c0_29] : memref<3x32x128xf32, #tpu.memory_space<vmem>>, vector<1x32x128xf32>
    %34 = vector.shape_cast %33 : vector<1x32x128xf32> to vector<32x128xf32>
    %c1_30 = arith.constant 1 : index
    %c0_31 = arith.constant 0 : index
    %c0_32 = arith.constant 0 : index
    %35 = vector.load %arg3[%c1_30, %c0_31, %c0_32] : memref<3x1x128xf32, #tpu.memory_space<vmem>>, vector<1x1x128xf32>
    %36 = vector.shape_cast %35 : vector<1x1x128xf32> to vector<1x128xf32>
    %cst_33 = arith.constant dense<0.000000e+00> : vector<16x128xf32>
    %37 = tpu.matmul %32, %34, %cst_33 {dimension_numbers = #tpu.dot_dimension_numbers<[1], [0], [0], [1], [0, 0, 1, 1], [], []>} : vector<16x32xf32>, vector<32x128xf32>, vector<16x128xf32> -> vector<16x128xf32>
    %38 = vector.broadcast %36 : vector<1x128xf32> to vector<16x128xf32>
    %39 = arith.addf %37, %38 : vector<16x128xf32>
    %40 = math.tanh %39 : vector<16x128xf32>
    %c1_34 = arith.constant 1 : index
    %c0_35 = arith.constant 0 : index
    %c0_36 = arith.constant 0 : index
    %41 = vector.load %arg4[%c1_34, %c0_35, %c0_36] : memref<3x128x24xf32, #tpu.memory_space<vmem>>, vector<1x128x24xf32>
    %42 = vector.shape_cast %41 : vector<1x128x24xf32> to vector<128x24xf32>
    %c1_37 = arith.constant 1 : index
    %c0_38 = arith.constant 0 : index
    %c0_39 = arith.constant 0 : index
    %43 = vector.load %arg5[%c1_37, %c0_38, %c0_39] : memref<3x1x24xf32, #tpu.memory_space<vmem>>, vector<1x1x24xf32>
    %44 = vector.shape_cast %43 : vector<1x1x24xf32> to vector<1x24xf32>
    %c1_40 = arith.constant 1 : index
    %c0_41 = arith.constant 0 : index
    %c0_42 = arith.constant 0 : index
    %45 = vector.load %arg6[%c1_40, %c0_41, %c0_42] : memref<3x128x24xf32, #tpu.memory_space<vmem>>, vector<1x128x24xf32>
    %46 = vector.shape_cast %45 : vector<1x128x24xf32> to vector<128x24xf32>
    %c1_43 = arith.constant 1 : index
    %c0_44 = arith.constant 0 : index
    %c0_45 = arith.constant 0 : index
    %47 = vector.load %arg7[%c1_43, %c0_44, %c0_45] : memref<3x1x24xf32, #tpu.memory_space<vmem>>, vector<1x1x24xf32>
    %48 = vector.shape_cast %47 : vector<1x1x24xf32> to vector<1x24xf32>
    %cst_46 = arith.constant dense<0.000000e+00> : vector<16x24xf32>
    %49 = tpu.matmul %40, %42, %cst_46 {dimension_numbers = #tpu.dot_dimension_numbers<[1], [0], [0], [1], [0, 0, 1, 1], [], []>} : vector<16x128xf32>, vector<128x24xf32>, vector<16x24xf32> -> vector<16x24xf32>
    %50 = vector.broadcast %44 : vector<1x24xf32> to vector<16x24xf32>
    %51 = arith.addf %49, %50 : vector<16x24xf32>
    %cst_47 = arith.constant dense<0.000000e+00> : vector<16x24xf32>
    %52 = tpu.matmul %40, %46, %cst_47 {dimension_numbers = #tpu.dot_dimension_numbers<[1], [0], [0], [1], [0, 0, 1, 1], [], []>} : vector<16x128xf32>, vector<128x24xf32>, vector<16x24xf32> -> vector<16x24xf32>
    %53 = vector.broadcast %48 : vector<1x24xf32> to vector<16x24xf32>
    %54 = arith.addf %52, %53 : vector<16x24xf32>
    %55 = arith.negf %54 : vector<16x24xf32>
    %56 = math.exp %55 : vector<16x24xf32>
    %cst_48 = arith.constant 1.000000e+00 : f32
    %57 = vector.broadcast %cst_48 : f32 to vector<16x24xf32>
    %58 = arith.addf %57, %56 : vector<16x24xf32>
    %59 = arith.divf %57, %58 : vector<16x24xf32>
    %60 = arith.mulf %51, %59 : vector<16x24xf32>
    %c0_49 = arith.constant 0 : index
    %c16 = arith.constant 16 : index
    %61 = vector.load %arg8[%c0_49, %c16] : memref<16x48xf32, #tpu.memory_space<vmem>>, vector<16x24xf32>
    tpu.vector_store %arg8[%c0_49, %c16], %60 {strides = array<i32>} : memref<16x48xf32, #tpu.memory_space<vmem>>, vector<16x24xf32>,
    %c0_50 = arith.constant 0 : index
    %c2 = arith.constant 2 : index
    %c0_51 = arith.constant 0 : index
    %62 = vector.load %arg1[%c0_50, %c2, %c0_51] : memref<16x3x32xf32, #tpu.memory_space<vmem>>, vector<16x1x32xf32>
    %63 = vector.shape_cast %62 : vector<16x1x32xf32> to vector<16x32xf32>
    %c2_52 = arith.constant 2 : index
    %c0_53 = arith.constant 0 : index
    %c0_54 = arith.constant 0 : index
    %64 = vector.load %arg2[%c2_52, %c0_53, %c0_54] : memref<3x32x128xf32, #tpu.memory_space<vmem>>, vector<1x32x128xf32>
    %65 = vector.shape_cast %64 : vector<1x32x128xf32> to vector<32x128xf32>
    %c2_55 = arith.constant 2 : index
    %c0_56 = arith.constant 0 : index
    %c0_57 = arith.constant 0 : index
    %66 = vector.load %arg3[%c2_55, %c0_56, %c0_57] : memref<3x1x128xf32, #tpu.memory_space<vmem>>, vector<1x1x128xf32>
    %67 = vector.shape_cast %66 : vector<1x1x128xf32> to vector<1x128xf32>
    %cst_58 = arith.constant dense<0.000000e+00> : vector<16x128xf32>
    %68 = tpu.matmul %63, %65, %cst_58 {dimension_numbers = #tpu.dot_dimension_numbers<[1], [0], [0], [1], [0, 0, 1, 1], [], []>} : vector<16x32xf32>, vector<32x128xf32>, vector<16x128xf32> -> vector<16x128xf32>
    %69 = vector.broadcast %67 : vector<1x128xf32> to vector<16x128xf32>
    %70 = arith.addf %68, %69 : vector<16x128xf32>
    %71 = math.tanh %70 : vector<16x128xf32>
    %c2_59 = arith.constant 2 : index
    %c0_60 = arith.constant 0 : index
    %c0_61 = arith.constant 0 : index
    %72 = vector.load %arg4[%c2_59, %c0_60, %c0_61] : memref<3x128x24xf32, #tpu.memory_space<vmem>>, vector<1x128x8xf32>
    %73 = vector.shape_cast %72 : vector<1x128x8xf32> to vector<128x8xf32>
    %c2_62 = arith.constant 2 : index
    %c0_63 = arith.constant 0 : index
    %c0_64 = arith.constant 0 : index
    %74 = vector.load %arg5[%c2_62, %c0_63, %c0_64] : memref<3x1x24xf32, #tpu.memory_space<vmem>>, vector<1x1x8xf32>
    %75 = vector.shape_cast %74 : vector<1x1x8xf32> to vector<1x8xf32>
    %c2_65 = arith.constant 2 : index
    %c0_66 = arith.constant 0 : index
    %c0_67 = arith.constant 0 : index
    %76 = vector.load %arg6[%c2_65, %c0_66, %c0_67] : memref<3x128x24xf32, #tpu.memory_space<vmem>>, vector<1x128x8xf32>
    %77 = vector.shape_cast %76 : vector<1x128x8xf32> to vector<128x8xf32>
    %c2_68 = arith.constant 2 : index
    %c0_69 = arith.constant 0 : index
    %c0_70 = arith.constant 0 : index
    %78 = vector.load %arg7[%c2_68, %c0_69, %c0_70] : memref<3x1x24xf32, #tpu.memory_space<vmem>>, vector<1x1x8xf32>
    %79 = vector.shape_cast %78 : vector<1x1x8xf32> to vector<1x8xf32>
    %cst_71 = arith.constant dense<0.000000e+00> : vector<16x8xf32>
    %80 = tpu.matmul %71, %73, %cst_71 {dimension_numbers = #tpu.dot_dimension_numbers<[1], [0], [0], [1], [0, 0, 1, 1], [], []>} : vector<16x128xf32>, vector<128x8xf32>, vector<16x8xf32> -> vector<16x8xf32>
    %81 = vector.broadcast %75 : vector<1x8xf32> to vector<16x8xf32>
    %82 = arith.addf %80, %81 : vector<16x8xf32>
    %cst_72 = arith.constant dense<0.000000e+00> : vector<16x8xf32>
    %83 = tpu.matmul %71, %77, %cst_72 {dimension_numbers = #tpu.dot_dimension_numbers<[1], [0], [0], [1], [0, 0, 1, 1], [], []>} : vector<16x128xf32>, vector<128x8xf32>, vector<16x8xf32> -> vector<16x8xf32>
    %84 = vector.broadcast %79 : vector<1x8xf32> to vector<16x8xf32>
    %85 = arith.addf %83, %84 : vector<16x8xf32>
    %86 = arith.negf %85 : vector<16x8xf32>
    %87 = math.exp %86 : vector<16x8xf32>
    %cst_73 = arith.constant 1.000000e+00 : f32
    %88 = vector.broadcast %cst_73 : f32 to vector<16x8xf32>
    %89 = arith.addf %88, %87 : vector<16x8xf32>
    %90 = arith.divf %88, %89 : vector<16x8xf32>
    %91 = arith.mulf %82, %90 : vector<16x8xf32>
    %c0_74 = arith.constant 0 : index
    %c40 = arith.constant 40 : index
    %92 = vector.load %arg8[%c0_74, %c40] : memref<16x48xf32, #tpu.memory_space<vmem>>, vector<16x8xf32>
    tpu.vector_store %arg8[%c0_74, %c40], %91 {strides = array<i32>} : memref<16x48xf32, #tpu.memory_space<vmem>>, vector<16x8xf32>,
    return
  }
  func.func @transform_0(%arg0: i32) -> (i32, i32, i32) {
    %c0_i32 = arith.constant 0 : i32
    %c0_i32_0 = arith.constant 0 : i32
    %c0_i32_1 = arith.constant 0 : i32
    return %arg0, %c0_i32, %c0_i32_0 : i32, i32, i32
  }
  func.func @transform_1(%arg0: i32) -> (i32, i32, i32) {
    %c0_i32 = arith.constant 0 : i32
    %c0_i32_0 = arith.constant 0 : i32
    %c0_i32_1 = arith.constant 0 : i32
    %c0_i32_2 = arith.constant 0 : i32
    return %c0_i32, %c0_i32_0, %c0_i32_1 : i32, i32, i32
  }
  func.func @transform_2(%arg0: i32) -> (i32, i32, i32) {
    %c0_i32 = arith.constant 0 : i32
    %c0_i32_0 = arith.constant 0 : i32
    %c0_i32_1 = arith.constant 0 : i32
    %c0_i32_2 = arith.constant 0 : i32
    return %c0_i32, %c0_i32_0, %c0_i32_1 : i32, i32, i32
  }
  func.func @transform_3(%arg0: i32) -> (i32, i32, i32) {
    %c0_i32 = arith.constant 0 : i32
    %c0_i32_0 = arith.constant 0 : i32
    %c0_i32_1 = arith.constant 0 : i32
    %c0_i32_2 = arith.constant 0 : i32
    return %c0_i32, %c0_i32_0, %c0_i32_1 : i32, i32, i32
  }
  func.func @transform_4(%arg0: i32) -> (i32, i32, i32) {
    %c0_i32 = arith.constant 0 : i32
    %c0_i32_0 = arith.constant 0 : i32
    %c0_i32_1 = arith.constant 0 : i32
    %c0_i32_2 = arith.constant 0 : i32
    return %c0_i32, %c0_i32_0, %c0_i32_1 : i32, i32, i32
  }
  func.func @transform_5(%arg0: i32) -> (i32, i32, i32) {
    %c0_i32 = arith.constant 0 : i32
    %c0_i32_0 = arith.constant 0 : i32
    %c0_i32_1 = arith.constant 0 : i32
    %c0_i32_2 = arith.constant 0 : i32
    return %c0_i32, %c0_i32_0, %c0_i32_1 : i32, i32, i32
  }
  func.func @transform_6(%arg0: i32) -> (i32, i32, i32) {
    %c0_i32 = arith.constant 0 : i32
    %c0_i32_0 = arith.constant 0 : i32
    %c0_i32_1 = arith.constant 0 : i32
    %c0_i32_2 = arith.constant 0 : i32
    return %c0_i32, %c0_i32_0, %c0_i32_1 : i32, i32, i32
  }
  func.func @transform_7(%arg0: i32) -> (i32, i32) {
    %c0_i32 = arith.constant 0 : i32
    %c0_i32_0 = arith.constant 0 : i32
    return %arg0, %c0_i32 : i32, i32
  }
}

</mosaic_0001>

<llo_original>
// kernel: tpu_custom_call.1
$region0: #{tpu_custom_call.1}
  #allocation0 [shape = 'u32[]', space=smem, size = 0x4, offset = 0x4, fixed_abs, tag = 'smem constant byte address 0x4 - core index']
  #allocation1 [shape = 'u32[144,128]{1,0:T(1,128)}', space=vmem, size = 0x12000, scoped, tag = 'internal scratch']
  %s0 = inlined_call_operand.vmem [shape: f32[16,3,32], index: 0, kind: input, shape index: {}]
  %s1 = inlined_call_operand.vmem [shape: f32[3,32,128], index: 1, kind: input, shape index: {}]
  %s2 = inlined_call_operand.vmem [shape: f32[3,1,128], index: 2, kind: input, shape index: {}]
  %s3 = inlined_call_operand.vmem [shape: f32[3,128,24], index: 3, kind: input, shape index: {}]
  %s4 = inlined_call_operand.vmem [shape: f32[3,1,24], index: 4, kind: input, shape index: {}]
  %s5 = inlined_call_operand.vmem [shape: f32[3,128,24], index: 5, kind: input, shape index: {}]
  %s6 = inlined_call_operand.vmem [shape: f32[3,1,24], index: 6, kind: input, shape index: {}]
  %s7 = inlined_call_operand.hbm [shape: f32[16,48], index: 7, kind: output, shape index: {}]
  %s8 = sld [smem:[#allocation0]]
  $region38: #{tpu_custom_call.1} parent=0
    _
  %s10 = ssub.s32 1, %s8
  %s11 = scalar_select 0, %s10, %s8
  $region1: #{tpu_custom_call.1} parent=0
    #allocation2 [shape = 'u8[8192]{0}', space=vmem, size = 0x2000, scoped, tag = 'output window, operand 0, single buffered']
    #allocation3 [shape = 's32[1]{0}', space=sflag, size = 0x4, scoped, tag = 'scoped memory for tpu_custom_call.1']
    %12 = vsyncpa [#allocation3], 0
    // Predicated region
    $region2: #{tpu_custom_call.1} parent=1 // pred_check
      _
    $region3: #{tpu_custom_call.1} parent=1 // pred_check_branch
      %14 = sbr.rel (0) target = $region5
    $region4: #{tpu_custom_call.1} parent=1 // pred_region
      _
    $region5: #{tpu_custom_call.1} parent=1 // pred_fallthru
      _
    // Predicated region
    $region6: #{tpu_custom_call.1} parent=1 // pred_check
      _
    $region7: #{tpu_custom_call.1} parent=1 // pred_check_branch
      %16 = sbr.rel (0) target = $region9
    $region8: #{tpu_custom_call.1} parent=1 // pred_region
      _
    $region9: #{tpu_custom_call.1} parent=1 // pred_fallthru
      _
    // Predicated region
    $region10: #{tpu_custom_call.1} parent=1 // pred_check
      _
    $region11: #{tpu_custom_call.1} parent=1 // pred_check_branch
      %18 = sbr.rel (0) target = $region13
    $region12: #{tpu_custom_call.1} parent=1 // pred_region
      _
    $region13: #{tpu_custom_call.1} parent=1 // pred_fallthru
      _
    // Predicated region
    $region14: #{tpu_custom_call.1} parent=1 // pred_check
      _
    $region15: #{tpu_custom_call.1} parent=1 // pred_check_branch
      %20 = sbr.rel (0) target = $region17
    $region16: #{tpu_custom_call.1} parent=1 // pred_region
      _
    $region17: #{tpu_custom_call.1} parent=1 // pred_fallthru
      _
    // Predicated region
    $region18: #{tpu_custom_call.1} parent=1 // pred_check
      _
    $region19: #{tpu_custom_call.1} parent=1 // pred_check_branch
      %22 = sbr.rel (0) target = $region21
    $region20: #{tpu_custom_call.1} parent=1 // pred_region
      _
    $region21: #{tpu_custom_call.1} parent=1 // pred_fallthru
      _
    // Predicated region
    $region22: #{tpu_custom_call.1} parent=1 // pred_check
      _
    $region23: #{tpu_custom_call.1} parent=1 // pred_check_branch
      %24 = sbr.rel (0) target = $region25
    $region24: #{tpu_custom_call.1} parent=1 // pred_region
      _
    $region25: #{tpu_custom_call.1} parent=1 // pred_fallthru
      _
    // Predicated region
    $region26: #{tpu_custom_call.1} parent=1 // pred_check
      _
    $region27: #{tpu_custom_call.1} parent=1 // pred_check_branch
      %26 = sbr.rel (0) target = $region29
    $region28: #{tpu_custom_call.1} parent=1 // pred_region
      _
    $region29: #{tpu_custom_call.1} parent=1 // pred_fallthru
      _
    %v27 = vld [vmem:[%s0] sm:$0x1]
    %v28 = vld [vmem:[%s0 + $0x4] sm:$0x1]
    %v29 = vld [vmem:[%s0 + $0x8] sm:$0x1]
    %v30 = vld [vmem:[%s0 + $0xc] sm:$0x1]
    %v31 = vld [vmem:[%s0 + $0x10] sm:$0x1]
    %v32 = vld [vmem:[%s0 + $0x14] sm:$0x1]
    %v33 = vld [vmem:[%s0 + $0x18] sm:$0x1]
    %v34 = vld [vmem:[%s0 + $0x1c] sm:$0x1]
    %v35 = vld [vmem:[%s0 + $0x20] sm:$0x1]
    %v36 = vld [vmem:[%s0 + $0x24] sm:$0x1]
    %v37 = vld [vmem:[%s0 + $0x28] sm:$0x1]
    %v38 = vld [vmem:[%s0 + $0x2c] sm:$0x1]
    %v39 = vld [vmem:[%s0 + $0x30] sm:$0x1]
    %v40 = vld [vmem:[%s0 + $0x34] sm:$0x1]
    %v41 = vld [vmem:[%s0 + $0x38] sm:$0x1]
    %v42 = vld [vmem:[%s0 + $0x3c] sm:$0x1]
    %v43 = vld [vmem:[%s1] sm:$0xff]
    %v44 = vld [vmem:[%s1 + $0x8] sm:$0xff]
    %v45 = vld [vmem:[%s1 + $0x10] sm:$0xff]
    %v46 = vld [vmem:[%s1 + $0x18] sm:$0xff]
    %v47 = vld [vmem:[%s2] sm:$0x1]
    %v49 = vlaneseq
    %v50 = vshrl.u32 %v49, 7
    %v51 = vsub.s32 0, %v50
    %v52 = vrot.slane %v47, %v51
    %v70 = vrot.slane %v28, 7
    %vm71 = vcmask 1041409
    %v72 = vsel %vm71, %v70, %v27
    %v73 = vrot.slane %v29, 6
    %vm74 = vcmask 1042434
    %v75 = vsel %vm74, %v73, %v72
    %v76 = vrot.slane %v30, 5
    %vm77 = vcmask 1043459
    %v78 = vsel %vm77, %v76, %v75
    %v79 = vrot.slane %v31, 4
    %vm80 = vcmask 1044484
    %v81 = vsel %vm80, %v79, %v78
    %v82 = vrot.slane %v32, 3
    %vm83 = vcmask 1045509
    %v84 = vsel %vm83, %v82, %v81
    %v85 = vrot.slane %v33, 2
    %vm86 = vcmask 1046534
    %v87 = vsel %vm86, %v85, %v84
    %v88 = vrot.slane %v34, 1
    %vm89 = vcmask 1047559
    %v90 = vsel %vm89, %v88, %v87
    %v91 = vrot.slane %v36, 7
    %v92 = vsel %vm71, %v91, %v35
    %v93 = vrot.slane %v37, 6
    %v94 = vsel %vm74, %v93, %v92
    %v95 = vrot.slane %v38, 5
    %v96 = vsel %vm77, %v95, %v94
    %v97 = vrot.slane %v39, 4
    %v98 = vsel %vm80, %v97, %v96
    %v99 = vrot.slane %v40, 3
    %v100 = vsel %vm83, %v99, %v98
    %v101 = vrot.slane %v41, 2
    %v102 = vsel %vm86, %v101, %v100
    %v103 = vrot.slane %v42, 1
    %v104 = vsel %vm89, %v103, %v102
    %vm105 = vcmask 261120
    %v106 = vsel %vm105, %v90, 0
    %v108 = vsel %vm105, %v104, 0
    %110 = vmatprep.subr.mxu0 0.0
    %111 = vmatpush1.msra.mxu0 %v43
    %112 = vmatprep.subr.mxu0 0.0
    %113 = vmatpush1.msra.mxu0 %v44
    %114 = vmatprep.subr.mxu0 0.0
    %115 = vmatpush1.msra.mxu0 %v45
    %116 = vmatprep.subr.mxu0 0.0
    %117 = vmatpush1.msra.mxu0 %v46
    %118 = vmatprep.subr.mxu0 0.0
    %119 = vmatpush1.msra.mxu0 0.0
    %120 = vmatprep.subr.mxu0 0.0
    %121 = vmatpush1.msra.mxu0 0.0
    %122 = vmatprep.subr.mxu0 0.0
    %123 = vmatpush1.msra.mxu0 0.0
    %124 = vmatprep.subr.mxu0 0.0
    %125 = vmatpush1.msra.mxu0 0.0
    %126 = vmatprep.subr.mxu0 0.0
    %127 = vmatpush1.msra.mxu0 0.0
    %128 = vmatprep.subr.mxu0 0.0
    %129 = vmatpush1.msra.mxu0 0.0
    %130 = vmatprep.subr.mxu0 0.0
    %131 = vmatpush1.msra.mxu0 0.0
    %132 = vmatprep.subr.mxu0 0.0
    %133 = vmatpush1.msra.mxu0 0.0
    %134 = vmatprep.subr.mxu0 0.0
    %135 = vmatpush1.msra.mxu0 0.0
    %136 = vmatprep.subr.mxu0 0.0
    %137 = vmatpush1.msra.mxu0 0.0
    %138 = vmatprep.subr.mxu0 0.0
    %139 = vmatpush1.msra.mxu0 0.0
    %140 = vmatprep.subr.mxu0 0.0
    %141 = vmatpush1.msra.mxu0 0.0
    %142 = vmatprep.subr.mxu0 0.0
    %143 = vmatpush1.msra.mxu0 0.0
    %144 = vmatprep.subr.mxu0 0.0
    %145 = vmatpush1.msra.mxu0 0.0
    %146 = vmatprep.subr.mxu0 0.0
    %147 = vmatpush1.msra.mxu0 0.0
    %148 = vmatprep.subr.mxu0 0.0
    %149 = vmatpush1.msra.mxu0 0.0
    %150 = vmatprep.subr.mxu0 0.0
    %151 = vmatpush1.msra.mxu0 0.0
    %152 = vmatprep.subr.mxu0 0.0
    %153 = vmatpush1.msra.mxu0 0.0
    %154 = vmatprep.subr.mxu0 0.0
    %155 = vmatpush1.msra.mxu0 0.0
    %156 = vmatprep.subr.mxu0 0.0
    %157 = vmatpush1.msra.mxu0 0.0
    %158 = vmatprep.subr.mxu0 0.0
    %159 = vmatpush1.msra.mxu0 0.0
    %160 = vmatprep.subr.mxu0 0.0
    %161 = vmatpush1.msra.mxu0 0.0
    %162 = vmatprep.subr.mxu0 0.0
    %163 = vmatpush1.msra.mxu0 0.0
    %164 = vmatprep.subr.mxu0 0.0
    %165 = vmatpush1.msra.mxu0 0.0
    %166 = vmatprep.subr.mxu0 0.0
    %167 = vmatpush1.msra.mxu0 0.0
    %168 = vmatprep.subr.mxu0 0.0
    %169 = vmatpush1.msra.mxu0 0.0
    %170 = vmatprep.subr.mxu0 0.0
    %171 = vmatpush1.msra.mxu0 0.0
    %172 = vmatprep.subr.mxu0 0.0
    %173 = vmatpush1.msra.mxu0 0.0
    %174 = vmatprep.mubr.f32.mxu0 0.0
    %175 = vmatmul.mubr.f32.gmra.mrb[0].mxu0 %v106
    %v176 = vpop.f32.mrb[0].mxu0
    %v177 = vadd.f32 %v52, %v176
    %v178 = vpop.f32.mrb[0].mxu0
    %179 = vmatprep.mubr.f32.mxu0 0.0
    %180 = vmatmul.mubr.f32.gmra.mrb[0].mxu0 %v108
    %v181 = vpop.f32.mrb[0].mxu0
    %v182 = vadd.f32 %v52, %v181
    %v183 = vpop.f32.mrb[0].mxu0
    %184 = vdwg.mxu0
    %v185 = vtanh.pop %v177
    %v186 = vtanh.pop %v182
    %v187 = vld [vmem:[%s3] sm:$0xff]
    %v188 = vld [vmem:[%s3 + $0x8] sm:$0xff]
    %v189 = vld [vmem:[%s3 + $0x10] sm:$0xff]
    %v190 = vld [vmem:[%s3 + $0x18] sm:$0xff]
    %v191 = vld [vmem:[%s3 + $0x20] sm:$0xff]
    %v192 = vld [vmem:[%s3 + $0x28] sm:$0xff]
    %v193 = vld [vmem:[%s3 + $0x30] sm:$0xff]
    %v194 = vld [vmem:[%s3 + $0x38] sm:$0xff]
    %v195 = vld [vmem:[%s3 + $0x40] sm:$0xff]
    %v196 = vld [vmem:[%s3 + $0x48] sm:$0xff]
    %v197 = vld [vmem:[%s3 + $0x50] sm:$0xff]
    %v198 = vld [vmem:[%s3 + $0x58] sm:$0xff]
    %v199 = vld [vmem:[%s3 + $0x60] sm:$0xff]
    %v200 = vld [vmem:[%s3 + $0x68] sm:$0xff]
    %v201 = vld [vmem:[%s3 + $0x70] sm:$0xff]
    %v202 = vld [vmem:[%s3 + $0x78] sm:$0xff]
    %v203 = vld [vmem:[%s4] sm:$0x1]
    %v204 = vld [vmem:[%s5] sm:$0xff]
    %v205 = vld [vmem:[%s5 + $0x8] sm:$0xff]
    %v206 = vld [vmem:[%s5 + $0x10] sm:$0xff]
    %v207 = vld [vmem:[%s5 + $0x18] sm:$0xff]
    %v208 = vld [vmem:[%s5 + $0x20] sm:$0xff]
    %v209 = vld [vmem:[%s5 + $0x28] sm:$0xff]
    %v210 = vld [vmem:[%s5 + $0x30] sm:$0xff]
    %v211 = vld [vmem:[%s5 + $0x38] sm:$0xff]
    %v212 = vld [vmem:[%s5 + $0x40] sm:$0xff]
    %v213 = vld [vmem:[%s5 + $0x48] sm:$0xff]
    %v214 = vld [vmem:[%s5 + $0x50] sm:$0xff]
    %v215 = vld [vmem:[%s5 + $0x58] sm:$0xff]
    %v216 = vld [vmem:[%s5 + $0x60] sm:$0xff]
    %v217 = vld [vmem:[%s5 + $0x68] sm:$0xff]
    %v218 = vld [vmem:[%s5 + $0x70] sm:$0xff]
    %v219 = vld [vmem:[%s5 + $0x78] sm:$0xff]
    %v220 = vld [vmem:[%s6] sm:$0x1]
    %v222 = vlaneseq
    %v223 = vshrl.u32 %v222, 7
    %v224 = vsub.s32 0, %v223
    %v225 = vrot.slane %v203, %v224
    %227 = vmatprep.subr.mxu0 0.0
    %228 = vmatpush1.msra.mxu0 %v187
    %229 = vmatprep.subr.mxu0 0.0
    %230 = vmatpush1.msra.mxu0 %v188
    %231 = vmatprep.subr.mxu0 0.0
    %232 = vmatpush1.msra.mxu0 %v189
    %233 = vmatprep.subr.mxu0 0.0
    %234 = vmatpush1.msra.mxu0 %v190
    %235 = vmatprep.subr.mxu0 0.0
    %236 = vmatpush1.msra.mxu0 %v191
    %237 = vmatprep.subr.mxu0 0.0
    %238 = vmatpush1.msra.mxu0 %v192
    %239 = vmatprep.subr.mxu0 0.0
    %240 = vmatpush1.msra.mxu0 %v193
    %241 = vmatprep.subr.mxu0 0.0
    %242 = vmatpush1.msra.mxu0 %v194
    %243 = vmatprep.subr.mxu0 0.0
    %244 = vmatpush1.msra.mxu0 %v195
    %245 = vmatprep.subr.mxu0 0.0
    %246 = vmatpush1.msra.mxu0 %v196
    %247 = vmatprep.subr.mxu0 0.0
    %248 = vmatpush1.msra.mxu0 %v197
    %249 = vmatprep.subr.mxu0 0.0
    %250 = vmatpush1.msra.mxu0 %v198
    %251 = vmatprep.subr.mxu0 0.0
    %252 = vmatpush1.msra.mxu0 %v199
    %253 = vmatprep.subr.mxu0 0.0
    %254 = vmatpush1.msra.mxu0 %v200
    %255 = vmatprep.subr.mxu0 0.0
    %256 = vmatpush1.msra.mxu0 %v201
    %257 = vmatprep.subr.mxu0 0.0
    %258 = vmatpush1.msra.mxu0 %v202
    %259 = vmatprep.subr.mxu0 0.0
    %260 = vmatpush1.msra.mxu0 0.0
    %261 = vmatprep.subr.mxu0 0.0
    %262 = vmatpush1.msra.mxu0 0.0
    %263 = vmatprep.subr.mxu0 0.0
    %264 = vmatpush1.msra.mxu0 0.0
    %265 = vmatprep.subr.mxu0 0.0
    %266 = vmatpush1.msra.mxu0 0.0
    %267 = vmatprep.subr.mxu0 0.0
    %268 = vmatpush1.msra.mxu0 0.0
    %269 = vmatprep.subr.mxu0 0.0
    %270 = vmatpush1.msra.mxu0 0.0
    %271 = vmatprep.subr.mxu0 0.0
    %272 = vmatpush1.msra.mxu0 0.0
    %273 = vmatprep.subr.mxu0 0.0
    %274 = vmatpush1.msra.mxu0 0.0
    %275 = vmatprep.subr.mxu0 0.0
    %276 = vmatpush1.msra.mxu0 0.0
    %277 = vmatprep.subr.mxu0 0.0
    %278 = vmatpush1.msra.mxu0 0.0
    %279 = vmatprep.subr.mxu0 0.0
    %280 = vmatpush1.msra.mxu0 0.0
    %281 = vmatprep.subr.mxu0 0.0
    %282 = vmatpush1.msra.mxu0 0.0
    %283 = vmatprep.subr.mxu0 0.0
    %284 = vmatpush1.msra.mxu0 0.0
    %285 = vmatprep.subr.mxu0 0.0
    %286 = vmatpush1.msra.mxu0 0.0
    %287 = vmatprep.subr.mxu0 0.0
    %288 = vmatpush1.msra.mxu0 0.0
    %289 = vmatprep.subr.mxu0 0.0
    %290 = vmatpush1.msra.mxu0 0.0
    %291 = vmatprep.mubr.f32.mxu0 0.0
    %292 = vmatmul.mubr.f32.gmra.mrb[0].mxu0 %v185
    %v293 = vpop.f32.mrb[0].mxu0
    %v294 = vadd.f32 %v225, %v293
    %v295 = vpop.f32.mrb[0].mxu0
    %296 = vmatprep.mubr.f32.mxu0 0.0
    %297 = vmatmul.mubr.f32.gmra.mrb[0].mxu0 %v186
    %v298 = vpop.f32.mrb[0].mxu0
    %v299 = vadd.f32 %v225, %v298
    %v300 = vpop.f32.mrb[0].mxu0
    %301 = vdwg.mxu0
    %v303 = vlaneseq
    %v304 = vshrl.u32 %v303, 7
    %v305 = vsub.s32 0, %v304
    %v306 = vrot.slane %v220, %v305
    %308 = vmatprep.subr.mxu0 0.0
    %309 = vmatpush1.msra.mxu0 %v204
    %310 = vmatprep.subr.mxu0 0.0
    %311 = vmatpush1.msra.mxu0 %v205
    %312 = vmatprep.subr.mxu0 0.0
    %313 = vmatpush1.msra.mxu0 %v206
    %314 = vmatprep.subr.mxu0 0.0
    %315 = vmatpush1.msra.mxu0 %v207
    %316 = vmatprep.subr.mxu0 0.0
    %317 = vmatpush1.msra.mxu0 %v208
    %318 = vmatprep.subr.mxu0 0.0
    %319 = vmatpush1.msra.mxu0 %v209
    %320 = vmatprep.subr.mxu0 0.0
    %321 = vmatpush1.msra.mxu0 %v210
    %322 = vmatprep.subr.mxu0 0.0
    %323 = vmatpush1.msra.mxu0 %v211
    %324 = vmatprep.subr.mxu0 0.0
    %325 = vmatpush1.msra.mxu0 %v212
    %326 = vmatprep.subr.mxu0 0.0
    %327 = vmatpush1.msra.mxu0 %v213
    %328 = vmatprep.subr.mxu0 0.0
    %329 = vmatpush1.msra.mxu0 %v214
    %330 = vmatprep.subr.mxu0 0.0
    %331 = vmatpush1.msra.mxu0 %v215
    %332 = vmatprep.subr.mxu0 0.0
    %333 = vmatpush1.msra.mxu0 %v216
    %334 = vmatprep.subr.mxu0 0.0
    %335 = vmatpush1.msra.mxu0 %v217
    %336 = vmatprep.subr.mxu0 0.0
    %337 = vmatpush1.msra.mxu0 %v218
    %338 = vmatprep.subr.mxu0 0.0
    %339 = vmatpush1.msra.mxu0 %v219
    %340 = vmatprep.subr.mxu0 0.0
    %341 = vmatpush1.msra.mxu0 0.0
    %342 = vmatprep.subr.mxu0 0.0
    %343 = vmatpush1.msra.mxu0 0.0
    %344 = vmatprep.subr.mxu0 0.0
    %345 = vmatpush1.msra.mxu0 0.0
    %346 = vmatprep.subr.mxu0 0.0
    %347 = vmatpush1.msra.mxu0 0.0
    %348 = vmatprep.subr.mxu0 0.0
    %349 = vmatpush1.msra.mxu0 0.0
    %350 = vmatprep.subr.mxu0 0.0
    %351 = vmatpush1.msra.mxu0 0.0
    %352 = vmatprep.subr.mxu0 0.0
    %353 = vmatpush1.msra.mxu0 0.0
    %354 = vmatprep.subr.mxu0 0.0
    %355 = vmatpush1.msra.mxu0 0.0
    %356 = vmatprep.subr.mxu0 0.0
    %357 = vmatpush1.msra.mxu0 0.0
    %358 = vmatprep.subr.mxu0 0.0
    %359 = vmatpush1.msra.mxu0 0.0
    %360 = vmatprep.subr.mxu0 0.0
    %361 = vmatpush1.msra.mxu0 0.0
    %362 = vmatprep.subr.mxu0 0.0
    %363 = vmatpush1.msra.mxu0 0.0
    %364 = vmatprep.subr.mxu0 0.0
    %365 = vmatpush1.msra.mxu0 0.0
    %366 = vmatprep.subr.mxu0 0.0
    %367 = vmatpush1.msra.mxu0 0.0
    %368 = vmatprep.subr.mxu0 0.0
    %369 = vmatpush1.msra.mxu0 0.0
    %370 = vmatprep.subr.mxu0 0.0
    %371 = vmatpush1.msra.mxu0 0.0
    %372 = vmatprep.mubr.f32.mxu0 0.0
    %373 = vmatmul.mubr.f32.gmra.mrb[0].mxu0 %v185
    %v374 = vpop.f32.mrb[0].mxu0
    %v375 = vadd.f32 %v306, %v374
    %v376 = vpop.f32.mrb[0].mxu0
    %377 = vmatprep.mubr.f32.mxu0 0.0
    %378 = vmatmul.mubr.f32.gmra.mrb[0].mxu0 %v186
    %v379 = vpop.f32.mrb[0].mxu0
    %v380 = vadd.f32 %v306, %v379
    %v381 = vpop.f32.mrb[0].mxu0
    %382 = vdwg.mxu0
    %v383 = vxor.u32 %v375, 2147483648
    %v384 = vxor.u32 %v380, 2147483648
    %v385 = vmul.f32 %v383, 1.442695
    %v386 = vpow.pop %v385
    %v387 = vmul.f32 %v384, 1.442695
    %v388 = vpow.pop %v387
    %v389 = vadd.f32 %v386, 1.0
    %v390 = vadd.f32 %v388, 1.0
    %v391 = vrcp.pop %v389
    %v392 = vmul.f32 1.0, %v391
    %v393 = vrcp.pop %v390
    %v394 = vmul.f32 1.0, %v393
    %v395 = vmul.f32 %v294, %v392
    %v396 = vmul.f32 %v299, %v394
    %vm397 = vcmask 130048
    %398 = vst.msk [vmem:[#allocation2] sm:$0xff] %vm397, %v395
    %399 = vst.msk [vmem:[#allocation2 + $0x8] sm:$0xff] %vm397, %v396
    %v400 = vld [vmem:[%s0 + $0x1] sm:$0x1]
    %v401 = vld [vmem:[%s0 + $0x5] sm:$0x1]
    %v402 = vld [vmem:[%s0 + $0x9] sm:$0x1]
    %v403 = vld [vmem:[%s0 + $0xd] sm:$0x1]
    %v404 = vld [vmem:[%s0 + $0x11] sm:$0x1]
    %v405 = vld [vmem:[%s0 + $0x15] sm:$0x1]
    %v406 = vld [vmem:[%s0 + $0x19] sm:$0x1]
    %v407 = vld [vmem:[%s0 + $0x1d] sm:$0x1]
    %v408 = vld [vmem:[%s0 + $0x21] sm:$0x1]
    %v409 = vld [vmem:[%s0 + $0x25] sm:$0x1]
    %v410 = vld [vmem:[%s0 + $0x29] sm:$0x1]
    %v411 = vld [vmem:[%s0 + $0x2d] sm:$0x1]
    %v412 = vld [vmem:[%s0 + $0x31] sm:$0x1]
    %v413 = vld [vmem:[%s0 + $0x35] sm:$0x1]
    %v414 = vld [vmem:[%s0 + $0x39] sm:$0x1]
    %v415 = vld [vmem:[%s0 + $0x3d] sm:$0x1]
    %s416 = scalar_lea.vmem %s1, 32
    %v417 = vld [vmem:[%s416] sm:$0xff]
    %v418 = vld [vmem:[%s416 + $0x8] sm:$0xff]
    %v419 = vld [vmem:[%s416 + $0x10] sm:$0xff]
    %v420 = vld [vmem:[%s416 + $0x18] sm:$0xff]
    %s421 = scalar_lea.vmem %s2, 1
    %v422 = vld [vmem:[%s421] sm:$0x1]
    %v424 = vlaneseq
    %v425 = vshrl.u32 %v424, 7
    %v426 = vsub.s32 0, %v425
    %v427 = vrot.slane %v422, %v426
    %v445 = vrot.slane %v401, 7
    %v446 = vsel %vm71, %v445, %v400
    %v447 = vrot.slane %v402, 6
    %v448 = vsel %vm74, %v447, %v446
    %v449 = vrot.slane %v403, 5
    %v450 = vsel %vm77, %v449, %v448
    %v451 = vrot.slane %v404, 4
    %v452 = vsel %vm80, %v451, %v450
    %v453 = vrot.slane %v405, 3
    %v454 = vsel %vm83, %v453, %v452
    %v455 = vrot.slane %v406, 2
    %v456 = vsel %vm86, %v455, %v454
    %v457 = vrot.slane %v407, 1
    %v458 = vsel %vm89, %v457, %v456
    %v459 = vrot.slane %v409, 7
    %v460 = vsel %vm71, %v459, %v408
    %v461 = vrot.slane %v410, 6
    %v462 = vsel %vm74, %v461, %v460
    %v463 = vrot.slane %v411, 5
    %v464 = vsel %vm77, %v463, %v462
    %v465 = vrot.slane %v412, 4
    %v466 = vsel %vm80, %v465, %v464
    %v467 = vrot.slane %v413, 3
    %v468 = vsel %vm83, %v467, %v466
    %v469 = vrot.slane %v414, 2
    %v470 = vsel %vm86, %v469, %v468
    %v471 = vrot.slane %v415, 1
    %v472 = vsel %vm89, %v471, %v470
    %v473 = vsel %vm105, %v458, 0
    %v475 = vsel %vm105, %v472, 0
    %477 = vmatprep.subr.mxu0 0.0
    %478 = vmatpush1.msra.mxu0 %v417
    %479 = vmatprep.subr.mxu0 0.0
    %480 = vmatpush1.msra.mxu0 %v418
    %481 = vmatprep.subr.mxu0 0.0
    %482 = vmatpush1.msra.mxu0 %v419
    %483 = vmatprep.subr.mxu0 0.0
    %484 = vmatpush1.msra.mxu0 %v420
    %485 = vmatprep.subr.mxu0 0.0
    %486 = vmatpush1.msra.mxu0 0.0
    %487 = vmatprep.subr.mxu0 0.0
    %488 = vmatpush1.msra.mxu0 0.0
    %489 = vmatprep.subr.mxu0 0.0
    %490 = vmatpush1.msra.mxu0 0.0
    %491 = vmatprep.subr.mxu0 0.0
    %492 = vmatpush1.msra.mxu0 0.0
    %493 = vmatprep.subr.mxu0 0.0
    %494 = vmatpush1.msra.mxu0 0.0
    %495 = vmatprep.subr.mxu0 0.0
    %496 = vmatpush1.msra.mxu0 0.0
    %497 = vmatprep.subr.mxu0 0.0
    %498 = vmatpush1.msra.mxu0 0.0
    %499 = vmatprep.subr.mxu0 0.0
    %500 = vmatpush1.msra.mxu0 0.0
    %501 = vmatprep.subr.mxu0 0.0
    %502 = vmatpush1.msra.mxu0 0.0
    %503 = vmatprep.subr.mxu0 0.0
    %504 = vmatpush1.msra.mxu0 0.0
    %505 = vmatprep.subr.mxu0 0.0
    %506 = vmatpush1.msra.mxu0 0.0
    %507 = vmatprep.subr.mxu0 0.0
    %508 = vmatpush1.msra.mxu0 0.0
    %509 = vmatprep.subr.mxu0 0.0
    %510 = vmatpush1.msra.mxu0 0.0
    %511 = vmatprep.subr.mxu0 0.0
    %512 = vmatpush1.msra.mxu0 0.0
    %513 = vmatprep.subr.mxu0 0.0
    %514 = vmatpush1.msra.mxu0 0.0
    %515 = vmatprep.subr.mxu0 0.0
    %516 = vmatpush1.msra.mxu0 0.0
    %517 = vmatprep.subr.mxu0 0.0
    %518 = vmatpush1.msra.mxu0 0.0
    %519 = vmatprep.subr.mxu0 0.0
    %520 = vmatpush1.msra.mxu0 0.0
    %521 = vmatprep.subr.mxu0 0.0
    %522 = vmatpush1.msra.mxu0 0.0
    %523 = vmatprep.subr.mxu0 0.0
    %524 = vmatpush1.msra.mxu0 0.0
    %525 = vmatprep.subr.mxu0 0.0
    %526 = vmatpush1.msra.mxu0 0.0
    %527 = vmatprep.subr.mxu0 0.0
    %528 = vmatpush1.msra.mxu0 0.0
    %529 = vmatprep.subr.mxu0 0.0
    %530 = vmatpush1.msra.mxu0 0.0
    %531 = vmatprep.subr.mxu0 0.0
    %532 = vmatpush1.msra.mxu0 0.0
    %533 = vmatprep.subr.mxu0 0.0
    %534 = vmatpush1.msra.mxu0 0.0
    %535 = vmatprep.subr.mxu0 0.0
    %536 = vmatpush1.msra.mxu0 0.0
    %537 = vmatprep.subr.mxu0 0.0
    %538 = vmatpush1.msra.mxu0 0.0
    %539 = vmatprep.subr.mxu0 0.0
    %540 = vmatpush1.msra.mxu0 0.0
    %541 = vmatprep.mubr.f32.mxu0 0.0
    %542 = vmatmul.mubr.f32.gmra.mrb[0].mxu0 %v473
    %v543 = vpop.f32.mrb[0].mxu0
    %v544 = vadd.f32 %v427, %v543
    %v545 = vpop.f32.mrb[0].mxu0
    %546 = vmatprep.mubr.f32.mxu0 0.0
    %547 = vmatmul.mubr.f32.gmra.mrb[0].mxu0 %v475
    %v548 = vpop.f32.mrb[0].mxu0
    %v549 = vadd.f32 %v427, %v548
    %v550 = vpop.f32.mrb[0].mxu0
    %551 = vdwg.mxu0
    %v552 = vtanh.pop %v544
    %v553 = vtanh.pop %v549
    %s554 = scalar_lea.vmem %s3, 128
    %v555 = vld [vmem:[%s554] sm:$0xff]
    %v556 = vld [vmem:[%s554 + $0x8] sm:$0xff]
    %v557 = vld [vmem:[%s554 + $0x10] sm:$0xff]
    %v558 = vld [vmem:[%s554 + $0x18] sm:$0xff]
    %v559 = vld [vmem:[%s554 + $0x20] sm:$0xff]
    %v560 = vld [vmem:[%s554 + $0x28] sm:$0xff]
    %v561 = vld [vmem:[%s554 + $0x30] sm:$0xff]
    %v562 = vld [vmem:[%s554 + $0x38] sm:$0xff]
    %v563 = vld [vmem:[%s554 + $0x40] sm:$0xff]
    %v564 = vld [vmem:[%s554 + $0x48] sm:$0xff]
    %v565 = vld [vmem:[%s554 + $0x50] sm:$0xff]
    %v566 = vld [vmem:[%s554 + $0x58] sm:$0xff]
    %v567 = vld [vmem:[%s554 + $0x60] sm:$0xff]
    %v568 = vld [vmem:[%s554 + $0x68] sm:$0xff]
    %v569 = vld [vmem:[%s554 + $0x70] sm:$0xff]
    %v570 = vld [vmem:[%s554 + $0x78] sm:$0xff]
    %s571 = scalar_lea.vmem %s4, 1
    %v572 = vld [vmem:[%s571] sm:$0x1]
    %s573 = scalar_lea.vmem %s5, 128
    %v574 = vld [vmem:[%s573] sm:$0xff]
    %v575 = vld [vmem:[%s573 + $0x8] sm:$0xff]
    %v576 = vld [vmem:[%s573 + $0x10] sm:$0xff]
    %v577 = vld [vmem:[%s573 + $0x18] sm:$0xff]
    %v578 = vld [vmem:[%s573 + $0x20] sm:$0xff]
    %v579 = vld [vmem:[%s573 + $0x28] sm:$0xff]
    %v580 = vld [vmem:[%s573 + $0x30] sm:$0xff]
    %v581 = vld [vmem:[%s573 + $0x38] sm:$0xff]
    %v582 = vld [vmem:[%s573 + $0x40] sm:$0xff]
    %v583 = vld [vmem:[%s573 + $0x48] sm:$0xff]
    %v584 = vld [vmem:[%s573 + $0x50] sm:$0xff]
    %v585 = vld [vmem:[%s573 + $0x58] sm:$0xff]
    %v586 = vld [vmem:[%s573 + $0x60] sm:$0xff]
    %v587 = vld [vmem:[%s573 + $0x68] sm:$0xff]
    %v588 = vld [vmem:[%s573 + $0x70] sm:$0xff]
    %v589 = vld [vmem:[%s573 + $0x78] sm:$0xff]
    %s590 = scalar_lea.vmem %s6, 1
    %v591 = vld [vmem:[%s590] sm:$0x1]
    %v593 = vlaneseq
    %v594 = vshrl.u32 %v593, 7
    %v595 = vsub.s32 0, %v594
    %v596 = vrot.slane %v572, %v595
    %598 = vmatprep.subr.mxu0 0.0
    %599 = vmatpush1.msra.mxu0 %v555
    %600 = vmatprep.subr.mxu0 0.0
    %601 = vmatpush1.msra.mxu0 %v556
    %602 = vmatprep.subr.mxu0 0.0
    %603 = vmatpush1.msra.mxu0 %v557
    %604 = vmatprep.subr.mxu0 0.0
    %605 = vmatpush1.msra.mxu0 %v558
    %606 = vmatprep.subr.mxu0 0.0
    %607 = vmatpush1.msra.mxu0 %v559
    %608 = vmatprep.subr.mxu0 0.0
    %609 = vmatpush1.msra.mxu0 %v560
    %610 = vmatprep.subr.mxu0 0.0
    %611 = vmatpush1.msra.mxu0 %v561
    %612 = vmatprep.subr.mxu0 0.0
    %613 = vmatpush1.msra.mxu0 %v562
    %614 = vmatprep.subr.mxu0 0.0
    %615 = vmatpush1.msra.mxu0 %v563
    %616 = vmatprep.subr.mxu0 0.0
    %617 = vmatpush1.msra.mxu0 %v564
    %618 = vmatprep.subr.mxu0 0.0
    %619 = vmatpush1.msra.mxu0 %v565
    %620 = vmatprep.subr.mxu0 0.0
    %621 = vmatpush1.msra.mxu0 %v566
    %622 = vmatprep.subr.mxu0 0.0
    %623 = vmatpush1.msra.mxu0 %v567
    %624 = vmatprep.subr.mxu0 0.0
    %625 = vmatpush1.msra.mxu0 %v568
    %626 = vmatprep.subr.mxu0 0.0
    %627 = vmatpush1.msra.mxu0 %v569
    %628 = vmatprep.subr.mxu0 0.0
    %629 = vmatpush1.msra.mxu0 %v570
    %630 = vmatprep.subr.mxu0 0.0
    %631 = vmatpush1.msra.mxu0 0.0
    %632 = vmatprep.subr.mxu0 0.0
    %633 = vmatpush1.msra.mxu0 0.0
    %634 = vmatprep.subr.mxu0 0.0
    %635 = vmatpush1.msra.mxu0 0.0
    %636 = vmatprep.subr.mxu0 0.0
    %637 = vmatpush1.msra.mxu0 0.0
    %638 = vmatprep.subr.mxu0 0.0
    %639 = vmatpush1.msra.mxu0 0.0
    %640 = vmatprep.subr.mxu0 0.0
    %641 = vmatpush1.msra.mxu0 0.0
    %642 = vmatprep.subr.mxu0 0.0
    %643 = vmatpush1.msra.mxu0 0.0
    %644 = vmatprep.subr.mxu0 0.0
    %645 = vmatpush1.msra.mxu0 0.0
    %646 = vmatprep.subr.mxu0 0.0
    %647 = vmatpush1.msra.mxu0 0.0
    %648 = vmatprep.subr.mxu0 0.0
    %649 = vmatpush1.msra.mxu0 0.0
    %650 = vmatprep.subr.mxu0 0.0
    %651 = vmatpush1.msra.mxu0 0.0
    %652 = vmatprep.subr.mxu0 0.0
    %653 = vmatpush1.msra.mxu0 0.0
    %654 = vmatprep.subr.mxu0 0.0
    %655 = vmatpush1.msra.mxu0 0.0
    %656 = vmatprep.subr.mxu0 0.0
    %657 = vmatpush1.msra.mxu0 0.0
    %658 = vmatprep.subr.mxu0 0.0
    %659 = vmatpush1.msra.mxu0 0.0
    %660 = vmatprep.subr.mxu0 0.0
    %661 = vmatpush1.msra.mxu0 0.0
    %662 = vmatprep.mubr.f32.mxu0 0.0
    %663 = vmatmul.mubr.f32.gmra.mrb[0].mxu0 %v552
    %v664 = vpop.f32.mrb[0].mxu0
    %v665 = vadd.f32 %v596, %v664
    %v666 = vpop.f32.mrb[0].mxu0
    %667 = vmatprep.mubr.f32.mxu0 0.0
    %668 = vmatmul.mubr.f32.gmra.mrb[0].mxu0 %v553
    %v669 = vpop.f32.mrb[0].mxu0
    %v670 = vadd.f32 %v596, %v669
    %v671 = vpop.f32.mrb[0].mxu0
    %672 = vdwg.mxu0
    %v674 = vlaneseq
    %v675 = vshrl.u32 %v674, 7
    %v676 = vsub.s32 0, %v675
    %v677 = vrot.slane %v591, %v676
    %679 = vmatprep.subr.mxu0 0.0
    %680 = vmatpush1.msra.mxu0 %v574
    %681 = vmatprep.subr.mxu0 0.0
    %682 = vmatpush1.msra.mxu0 %v575
    %683 = vmatprep.subr.mxu0 0.0
    %684 = vmatpush1.msra.mxu0 %v576
    %685 = vmatprep.subr.mxu0 0.0
    %686 = vmatpush1.msra.mxu0 %v577
    %687 = vmatprep.subr.mxu0 0.0
    %688 = vmatpush1.msra.mxu0 %v578
    %689 = vmatprep.subr.mxu0 0.0
    %690 = vmatpush1.msra.mxu0 %v579
    %691 = vmatprep.subr.mxu0 0.0
    %692 = vmatpush1.msra.mxu0 %v580
    %693 = vmatprep.subr.mxu0 0.0
    %694 = vmatpush1.msra.mxu0 %v581
    %695 = vmatprep.subr.mxu0 0.0
    %696 = vmatpush1.msra.mxu0 %v582
    %697 = vmatprep.subr.mxu0 0.0
    %698 = vmatpush1.msra.mxu0 %v583
    %699 = vmatprep.subr.mxu0 0.0
    %700 = vmatpush1.msra.mxu0 %v584
    %701 = vmatprep.subr.mxu0 0.0
    %702 = vmatpush1.msra.mxu0 %v585
    %703 = vmatprep.subr.mxu0 0.0
    %704 = vmatpush1.msra.mxu0 %v586
    %705 = vmatprep.subr.mxu0 0.0
    %706 = vmatpush1.msra.mxu0 %v587
    %707 = vmatprep.subr.mxu0 0.0
    %708 = vmatpush1.msra.mxu0 %v588
    %709 = vmatprep.subr.mxu0 0.0
    %710 = vmatpush1.msra.mxu0 %v589
    %711 = vmatprep.subr.mxu0 0.0
    %712 = vmatpush1.msra.mxu0 0.0
    %713 = vmatprep.subr.mxu0 0.0
    %714 = vmatpush1.msra.mxu0 0.0
    %715 = vmatprep.subr.mxu0 0.0
    %716 = vmatpush1.msra.mxu0 0.0
    %717 = vmatprep.subr.mxu0 0.0
    %718 = vmatpush1.msra.mxu0 0.0
    %719 = vmatprep.subr.mxu0 0.0
    %720 = vmatpush1.msra.mxu0 0.0
    %721 = vmatprep.subr.mxu0 0.0
    %722 = vmatpush1.msra.mxu0 0.0
    %723 = vmatprep.subr.mxu0 0.0
    %724 = vmatpush1.msra.mxu0 0.0
    %725 = vmatprep.subr.mxu0 0.0
    %726 = vmatpush1.msra.mxu0 0.0
    %727 = vmatprep.subr.mxu0 0.0
    %728 = vmatpush1.msra.mxu0 0.0
    %729 = vmatprep.subr.mxu0 0.0
    %730 = vmatpush1.msra.mxu0 0.0
    %731 = vmatprep.subr.mxu0 0.0
    %732 = vmatpush1.msra.mxu0 0.0
    %733 = vmatprep.subr.mxu0 0.0
    %734 = vmatpush1.msra.mxu0 0.0
    %735 = vmatprep.subr.mxu0 0.0
    %736 = vmatpush1.msra.mxu0 0.0
    %737 = vmatprep.subr.mxu0 0.0
    %738 = vmatpush1.msra.mxu0 0.0
    %739 = vmatprep.subr.mxu0 0.0
    %740 = vmatpush1.msra.mxu0 0.0
    %741 = vmatprep.subr.mxu0 0.0
    %742 = vmatpush1.msra.mxu0 0.0
    %743 = vmatprep.mubr.f32.mxu0 0.0
    %744 = vmatmul.mubr.f32.gmra.mrb[0].mxu0 %v552
    %v745 = vpop.f32.mrb[0].mxu0
    %v746 = vadd.f32 %v677, %v745
    %v747 = vpop.f32.mrb[0].mxu0
    %748 = vmatprep.mubr.f32.mxu0 0.0
    %749 = vmatmul.mubr.f32.gmra.mrb[0].mxu0 %v553
    %v750 = vpop.f32.mrb[0].mxu0
    %v751 = vadd.f32 %v677, %v750
    %v752 = vpop.f32.mrb[0].mxu0
    %753 = vdwg.mxu0
    %v754 = vxor.u32 %v746, 2147483648
    %v755 = vxor.u32 %v751, 2147483648
    %v756 = vmul.f32 %v754, 1.442695
    %v757 = vpow.pop %v756
    %v758 = vmul.f32 %v755, 1.442695
    %v759 = vpow.pop %v758
    %v760 = vadd.f32 %v757, 1.0
    %v761 = vadd.f32 %v759, 1.0
    %v762 = vrcp.pop %v760
    %v763 = vmul.f32 1.0, %v762
    %v764 = vrcp.pop %v761
    %v765 = vmul.f32 1.0, %v764
    %v766 = vmul.f32 %v665, %v763
    %v767 = vmul.f32 %v670, %v765
    %770 = vrot.lane.b32.xlu0 %v766, 16
    %v771 = vpop.permute.xlu0 %770
    %772 = vrot.lane.b32.xlu0 %v767, 16
    %v773 = vpop.permute.xlu0 %772
    %vm776 = vcmask 326784
    %777 = vst.msk [vmem:[#allocation2] sm:$0xff] %vm776, %v771
    %778 = vst.msk [vmem:[#allocation2 + $0x8] sm:$0xff] %vm776, %v773
    %v779 = vld [vmem:[%s0 + $0x2] sm:$0x1]
    %v780 = vld [vmem:[%s0 + $0x6] sm:$0x1]
    %v781 = vld [vmem:[%s0 + $0xa] sm:$0x1]
    %v782 = vld [vmem:[%s0 + $0xe] sm:$0x1]
    %v783 = vld [vmem:[%s0 + $0x12] sm:$0x1]
    %v784 = vld [vmem:[%s0 + $0x16] sm:$0x1]
    %v785 = vld [vmem:[%s0 + $0x1a] sm:$0x1]
    %v786 = vld [vmem:[%s0 + $0x1e] sm:$0x1]
    %v787 = vld [vmem:[%s0 + $0x22] sm:$0x1]
    %v788 = vld [vmem:[%s0 + $0x26] sm:$0x1]
    %v789 = vld [vmem:[%s0 + $0x2a] sm:$0x1]
    %v790 = vld [vmem:[%s0 + $0x2e] sm:$0x1]
    %v791 = vld [vmem:[%s0 + $0x32] sm:$0x1]
    %v792 = vld [vmem:[%s0 + $0x36] sm:$0x1]
    %v793 = vld [vmem:[%s0 + $0x3a] sm:$0x1]
    %v794 = vld [vmem:[%s0 + $0x3e] sm:$0x1]
    %s795 = scalar_lea.vmem %s1, 64
    %v796 = vld [vmem:[%s795] sm:$0xff]
    %v797 = vld [vmem:[%s795 + $0x8] sm:$0xff]
    %v798 = vld [vmem:[%s795 + $0x10] sm:$0xff]
    %v799 = vld [vmem:[%s795 + $0x18] sm:$0xff]
    %s800 = scalar_lea.vmem %s2, 2
    %v801 = vld [vmem:[%s800] sm:$0x1]
    %v803 = vlaneseq
    %v804 = vshrl.u32 %v803, 7
    %v805 = vsub.s32 0, %v804
    %v806 = vrot.slane %v801, %v805
    %v824 = vrot.slane %v780, 7
    %v825 = vsel %vm71, %v824, %v779
    %v826 = vrot.slane %v781, 6
    %v827 = vsel %vm74, %v826, %v825
    %v828 = vrot.slane %v782, 5
    %v829 = vsel %vm77, %v828, %v827
    %v830 = vrot.slane %v783, 4
    %v831 = vsel %vm80, %v830, %v829
    %v832 = vrot.slane %v784, 3
    %v833 = vsel %vm83, %v832, %v831
    %v834 = vrot.slane %v785, 2
    %v835 = vsel %vm86, %v834, %v833
    %v836 = vrot.slane %v786, 1
    %v837 = vsel %vm89, %v836, %v835
    %v838 = vrot.slane %v788, 7
    %v839 = vsel %vm71, %v838, %v787
    %v840 = vrot.slane %v789, 6
    %v841 = vsel %vm74, %v840, %v839
    %v842 = vrot.slane %v790, 5
    %v843 = vsel %vm77, %v842, %v841
    %v844 = vrot.slane %v791, 4
    %v845 = vsel %vm80, %v844, %v843
    %v846 = vrot.slane %v792, 3
    %v847 = vsel %vm83, %v846, %v845
    %v848 = vrot.slane %v793, 2
    %v849 = vsel %vm86, %v848, %v847
    %v850 = vrot.slane %v794, 1
    %v851 = vsel %vm89, %v850, %v849
    %v852 = vsel %vm105, %v837, 0
    %v854 = vsel %vm105, %v851, 0
    %856 = vmatprep.subr.mxu0 0.0
    %857 = vmatpush1.msra.mxu0 %v796
    %858 = vmatprep.subr.mxu0 0.0
    %859 = vmatpush1.msra.mxu0 %v797
    %860 = vmatprep.subr.mxu0 0.0
    %861 = vmatpush1.msra.mxu0 %v798
    %862 = vmatprep.subr.mxu0 0.0
    %863 = vmatpush1.msra.mxu0 %v799
    %864 = vmatprep.subr.mxu0 0.0
    %865 = vmatpush1.msra.mxu0 0.0
    %866 = vmatprep.subr.mxu0 0.0
    %867 = vmatpush1.msra.mxu0 0.0
    %868 = vmatprep.subr.mxu0 0.0
    %869 = vmatpush1.msra.mxu0 0.0
    %870 = vmatprep.subr.mxu0 0.0
    %871 = vmatpush1.msra.mxu0 0.0
    %872 = vmatprep.subr.mxu0 0.0
    %873 = vmatpush1.msra.mxu0 0.0
    %874 = vmatprep.subr.mxu0 0.0
    %875 = vmatpush1.msra.mxu0 0.0
    %876 = vmatprep.subr.mxu0 0.0
    %877 = vmatpush1.msra.mxu0 0.0
    %878 = vmatprep.subr.mxu0 0.0
    %879 = vmatpush1.msra.mxu0 0.0
    %880 = vmatprep.subr.mxu0 0.0
    %881 = vmatpush1.msra.mxu0 0.0
    %882 = vmatprep.subr.mxu0 0.0
    %883 = vmatpush1.msra.mxu0 0.0
    %884 = vmatprep.subr.mxu0 0.0
    %885 = vmatpush1.msra.mxu0 0.0
    %886 = vmatprep.subr.mxu0 0.0
    %887 = vmatpush1.msra.mxu0 0.0
    %888 = vmatprep.subr.mxu0 0.0
    %889 = vmatpush1.msra.mxu0 0.0
    %890 = vmatprep.subr.mxu0 0.0
    %891 = vmatpush1.msra.mxu0 0.0
    %892 = vmatprep.subr.mxu0 0.0
    %893 = vmatpush1.msra.mxu0 0.0
    %894 = vmatprep.subr.mxu0 0.0
    %895 = vmatpush1.msra.mxu0 0.0
    %896 = vmatprep.subr.mxu0 0.0
    %897 = vmatpush1.msra.mxu0 0.0
    %898 = vmatprep.subr.mxu0 0.0
    %899 = vmatpush1.msra.mxu0 0.0
    %900 = vmatprep.subr.mxu0 0.0
    %901 = vmatpush1.msra.mxu0 0.0
    %902 = vmatprep.subr.mxu0 0.0
    %903 = vmatpush1.msra.mxu0 0.0
    %904 = vmatprep.subr.mxu0 0.0
    %905 = vmatpush1.msra.mxu0 0.0
    %906 = vmatprep.subr.mxu0 0.0
    %907 = vmatpush1.msra.mxu0 0.0
    %908 = vmatprep.subr.mxu0 0.0
    %909 = vmatpush1.msra.mxu0 0.0
    %910 = vmatprep.subr.mxu0 0.0
    %911 = vmatpush1.msra.mxu0 0.0
    %912 = vmatprep.subr.mxu0 0.0
    %913 = vmatpush1.msra.mxu0 0.0
    %914 = vmatprep.subr.mxu0 0.0
    %915 = vmatpush1.msra.mxu0 0.0
    %916 = vmatprep.subr.mxu0 0.0
    %917 = vmatpush1.msra.mxu0 0.0
    %918 = vmatprep.subr.mxu0 0.0
    %919 = vmatpush1.msra.mxu0 0.0
    %920 = vmatprep.mubr.f32.mxu0 0.0
    %921 = vmatmul.mubr.f32.gmra.mrb[0].mxu0 %v852
    %v922 = vpop.f32.mrb[0].mxu0
    %v923 = vadd.f32 %v806, %v922
    %v924 = vpop.f32.mrb[0].mxu0
    %925 = vmatprep.mubr.f32.mxu0 0.0
    %926 = vmatmul.mubr.f32.gmra.mrb[0].mxu0 %v854
    %v927 = vpop.f32.mrb[0].mxu0
    %v928 = vadd.f32 %v806, %v927
    %v929 = vpop.f32.mrb[0].mxu0
    %930 = vdwg.mxu0
    %v931 = vtanh.pop %v923
    %v932 = vtanh.pop %v928
    %s933 = scalar_lea.vmem %s3, 256
    %v934 = vld [vmem:[%s933] sm:$0xff]
    %v935 = vld [vmem:[%s933 + $0x8] sm:$0xff]
    %v936 = vld [vmem:[%s933 + $0x10] sm:$0xff]
    %v937 = vld [vmem:[%s933 + $0x18] sm:$0xff]
    %v938 = vld [vmem:[%s933 + $0x20] sm:$0xff]
    %v939 = vld [vmem:[%s933 + $0x28] sm:$0xff]
    %v940 = vld [vmem:[%s933 + $0x30] sm:$0xff]
    %v941 = vld [vmem:[%s933 + $0x38] sm:$0xff]
    %v942 = vld [vmem:[%s933 + $0x40] sm:$0xff]
    %v943 = vld [vmem:[%s933 + $0x48] sm:$0xff]
    %v944 = vld [vmem:[%s933 + $0x50] sm:$0xff]
    %v945 = vld [vmem:[%s933 + $0x58] sm:$0xff]
    %v946 = vld [vmem:[%s933 + $0x60] sm:$0xff]
    %v947 = vld [vmem:[%s933 + $0x68] sm:$0xff]
    %v948 = vld [vmem:[%s933 + $0x70] sm:$0xff]
    %v949 = vld [vmem:[%s933 + $0x78] sm:$0xff]
    %s950 = scalar_lea.vmem %s4, 2
    %v951 = vld [vmem:[%s950] sm:$0x1]
    %s952 = scalar_lea.vmem %s5, 256
    %v953 = vld [vmem:[%s952] sm:$0xff]
    %v954 = vld [vmem:[%s952 + $0x8] sm:$0xff]
    %v955 = vld [vmem:[%s952 + $0x10] sm:$0xff]
    %v956 = vld [vmem:[%s952 + $0x18] sm:$0xff]
    %v957 = vld [vmem:[%s952 + $0x20] sm:$0xff]
    %v958 = vld [vmem:[%s952 + $0x28] sm:$0xff]
    %v959 = vld [vmem:[%s952 + $0x30] sm:$0xff]
    %v960 = vld [vmem:[%s952 + $0x38] sm:$0xff]
    %v961 = vld [vmem:[%s952 + $0x40] sm:$0xff]
    %v962 = vld [vmem:[%s952 + $0x48] sm:$0xff]
    %v963 = vld [vmem:[%s952 + $0x50] sm:$0xff]
    %v964 = vld [vmem:[%s952 + $0x58] sm:$0xff]
    %v965 = vld [vmem:[%s952 + $0x60] sm:$0xff]
    %v966 = vld [vmem:[%s952 + $0x68] sm:$0xff]
    %v967 = vld [vmem:[%s952 + $0x70] sm:$0xff]
    %v968 = vld [vmem:[%s952 + $0x78] sm:$0xff]
    %s969 = scalar_lea.vmem %s6, 2
    %v970 = vld [vmem:[%s969] sm:$0x1]
    %v972 = vlaneseq
    %v973 = vshrl.u32 %v972, 7
    %v974 = vsub.s32 0, %v973
    %v975 = vrot.slane %v951, %v974
    %977 = vmatprep.subr.mxu0 0.0
    %978 = vmatpush1.msra.mxu0 %v934
    %979 = vmatprep.subr.mxu0 0.0
    %980 = vmatpush1.msra.mxu0 %v935
    %981 = vmatprep.subr.mxu0 0.0
    %982 = vmatpush1.msra.mxu0 %v936
    %983 = vmatprep.subr.mxu0 0.0
    %984 = vmatpush1.msra.mxu0 %v937
    %985 = vmatprep.subr.mxu0 0.0
    %986 = vmatpush1.msra.mxu0 %v938
    %987 = vmatprep.subr.mxu0 0.0
    %988 = vmatpush1.msra.mxu0 %v939
    %989 = vmatprep.subr.mxu0 0.0
    %990 = vmatpush1.msra.mxu0 %v940
    %991 = vmatprep.subr.mxu0 0.0
    %992 = vmatpush1.msra.mxu0 %v941
    %993 = vmatprep.subr.mxu0 0.0
    %994 = vmatpush1.msra.mxu0 %v942
    %995 = vmatprep.subr.mxu0 0.0
    %996 = vmatpush1.msra.mxu0 %v943
    %997 = vmatprep.subr.mxu0 0.0
    %998 = vmatpush1.msra.mxu0 %v944
    %999 = vmatprep.subr.mxu0 0.0
    %1000 = vmatpush1.msra.mxu0 %v945
    %1001 = vmatprep.subr.mxu0 0.0
    %1002 = vmatpush1.msra.mxu0 %v946
    %1003 = vmatprep.subr.mxu0 0.0
    %1004 = vmatpush1.msra.mxu0 %v947
    %1005 = vmatprep.subr.mxu0 0.0
    %1006 = vmatpush1.msra.mxu0 %v948
    %1007 = vmatprep.subr.mxu0 0.0
    %1008 = vmatpush1.msra.mxu0 %v949
    %1009 = vmatprep.subr.mxu0 0.0
    %1010 = vmatpush1.msra.mxu0 0.0
    %1011 = vmatprep.subr.mxu0 0.0
    %1012 = vmatpush1.msra.mxu0 0.0
    %1013 = vmatprep.subr.mxu0 0.0
    %1014 = vmatpush1.msra.mxu0 0.0
    %1015 = vmatprep.subr.mxu0 0.0
    %1016 = vmatpush1.msra.mxu0 0.0
    %1017 = vmatprep.subr.mxu0 0.0
    %1018 = vmatpush1.msra.mxu0 0.0
    %1019 = vmatprep.subr.mxu0 0.0
    %1020 = vmatpush1.msra.mxu0 0.0
    %1021 = vmatprep.subr.mxu0 0.0
    %1022 = vmatpush1.msra.mxu0 0.0
    %1023 = vmatprep.subr.mxu0 0.0
    %1024 = vmatpush1.msra.mxu0 0.0
    %1025 = vmatprep.subr.mxu0 0.0
    %1026 = vmatpush1.msra.mxu0 0.0
    %1027 = vmatprep.subr.mxu0 0.0
    %1028 = vmatpush1.msra.mxu0 0.0
    %1029 = vmatprep.subr.mxu0 0.0
    %1030 = vmatpush1.msra.mxu0 0.0
    %1031 = vmatprep.subr.mxu0 0.0
    %1032 = vmatpush1.msra.mxu0 0.0
    %1033 = vmatprep.subr.mxu0 0.0
    %1034 = vmatpush1.msra.mxu0 0.0
    %1035 = vmatprep.subr.mxu0 0.0
    %1036 = vmatpush1.msra.mxu0 0.0
    %1037 = vmatprep.subr.mxu0 0.0
    %1038 = vmatpush1.msra.mxu0 0.0
    %1039 = vmatprep.subr.mxu0 0.0
    %1040 = vmatpush1.msra.mxu0 0.0
    %1041 = vmatprep.mubr.f32.mxu0 0.0
    %1042 = vmatmul.mubr.f32.gmra.mrb[0].mxu0 %v931
    %v1043 = vpop.f32.mrb[0].mxu0
    %v1044 = vadd.f32 %v975, %v1043
    %v1045 = vpop.f32.mrb[0].mxu0
    %1046 = vmatprep.mubr.f32.mxu0 0.0
    %1047 = vmatmul.mubr.f32.gmra.mrb[0].mxu0 %v932
    %v1048 = vpop.f32.mrb[0].mxu0
    %v1049 = vadd.f32 %v975, %v1048
    %v1050 = vpop.f32.mrb[0].mxu0
    %1051 = vdwg.mxu0
    %v1053 = vlaneseq
    %v1054 = vshrl.u32 %v1053, 7
    %v1055 = vsub.s32 0, %v1054
    %v1056 = vrot.slane %v970, %v1055
    %1058 = vmatprep.subr.mxu0 0.0
    %1059 = vmatpush1.msra.mxu0 %v953
    %1060 = vmatprep.subr.mxu0 0.0
    %1061 = vmatpush1.msra.mxu0 %v954
    %1062 = vmatprep.subr.mxu0 0.0
    %1063 = vmatpush1.msra.mxu0 %v955
    %1064 = vmatprep.subr.mxu0 0.0
    %1065 = vmatpush1.msra.mxu0 %v956
    %1066 = vmatprep.subr.mxu0 0.0
    %1067 = vmatpush1.msra.mxu0 %v957
    %1068 = vmatprep.subr.mxu0 0.0
    %1069 = vmatpush1.msra.mxu0 %v958
    %1070 = vmatprep.subr.mxu0 0.0
    %1071 = vmatpush1.msra.mxu0 %v959
    %1072 = vmatprep.subr.mxu0 0.0
    %1073 = vmatpush1.msra.mxu0 %v960
    %1074 = vmatprep.subr.mxu0 0.0
    %1075 = vmatpush1.msra.mxu0 %v961
    %1076 = vmatprep.subr.mxu0 0.0
    %1077 = vmatpush1.msra.mxu0 %v962
    %1078 = vmatprep.subr.mxu0 0.0
    %1079 = vmatpush1.msra.mxu0 %v963
    %1080 = vmatprep.subr.mxu0 0.0
    %1081 = vmatpush1.msra.mxu0 %v964
    %1082 = vmatprep.subr.mxu0 0.0
    %1083 = vmatpush1.msra.mxu0 %v965
    %1084 = vmatprep.subr.mxu0 0.0
    %1085 = vmatpush1.msra.mxu0 %v966
    %1086 = vmatprep.subr.mxu0 0.0
    %1087 = vmatpush1.msra.mxu0 %v967
    %1088 = vmatprep.subr.mxu0 0.0
    %1089 = vmatpush1.msra.mxu0 %v968
    %1090 = vmatprep.subr.mxu0 0.0
    %1091 = vmatpush1.msra.mxu0 0.0
    %1092 = vmatprep.subr.mxu0 0.0
    %1093 = vmatpush1.msra.mxu0 0.0
    %1094 = vmatprep.subr.mxu0 0.0
    %1095 = vmatpush1.msra.mxu0 0.0
    %1096 = vmatprep.subr.mxu0 0.0
    %1097 = vmatpush1.msra.mxu0 0.0
    %1098 = vmatprep.subr.mxu0 0.0
    %1099 = vmatpush1.msra.mxu0 0.0
    %1100 = vmatprep.subr.mxu0 0.0
    %1101 = vmatpush1.msra.mxu0 0.0
    %1102 = vmatprep.subr.mxu0 0.0
    %1103 = vmatpush1.msra.mxu0 0.0
    %1104 = vmatprep.subr.mxu0 0.0
    %1105 = vmatpush1.msra.mxu0 0.0
    %1106 = vmatprep.subr.mxu0 0.0
    %1107 = vmatpush1.msra.mxu0 0.0
    %1108 = vmatprep.subr.mxu0 0.0
    %1109 = vmatpush1.msra.mxu0 0.0
    %1110 = vmatprep.subr.mxu0 0.0
    %1111 = vmatpush1.msra.mxu0 0.0
    %1112 = vmatprep.subr.mxu0 0.0
    %1113 = vmatpush1.msra.mxu0 0.0
    %1114 = vmatprep.subr.mxu0 0.0
    %1115 = vmatpush1.msra.mxu0 0.0
    %1116 = vmatprep.subr.mxu0 0.0
    %1117 = vmatpush1.msra.mxu0 0.0
    %1118 = vmatprep.subr.mxu0 0.0
    %1119 = vmatpush1.msra.mxu0 0.0
    %1120 = vmatprep.subr.mxu0 0.0
    %1121 = vmatpush1.msra.mxu0 0.0
    %1122 = vmatprep.mubr.f32.mxu0 0.0
    %1123 = vmatmul.mubr.f32.gmra.mrb[0].mxu0 %v931
    %v1124 = vpop.f32.mrb[0].mxu0
    %v1125 = vadd.f32 %v1056, %v1124
    %v1126 = vpop.f32.mrb[0].mxu0
    %1127 = vmatprep.mubr.f32.mxu0 0.0
    %1128 = vmatmul.mubr.f32.gmra.mrb[0].mxu0 %v932
    %v1129 = vpop.f32.mrb[0].mxu0
    %v1130 = vadd.f32 %v1056, %v1129
    %v1131 = vpop.f32.mrb[0].mxu0
    %1132 = vdwg.mxu0
    %v1133 = vxor.u32 %v1125, 2147483648
    %v1134 = vxor.u32 %v1130, 2147483648
    %v1135 = vmul.f32 %v1133, 1.442695
    %v1136 = vpow.pop %v1135
    %v1137 = vmul.f32 %v1134, 1.442695
    %v1138 = vpow.pop %v1137
    %v1139 = vadd.f32 %v1136, 1.0
    %v1140 = vadd.f32 %v1138, 1.0
    %v1141 = vrcp.pop %v1139
    %v1142 = vmul.f32 1.0, %v1141
    %v1143 = vrcp.pop %v1140
    %v1144 = vmul.f32 1.0, %v1143
    %v1145 = vmul.f32 %v1044, %v1142
    %v1146 = vmul.f32 %v1049, %v1144
    %1149 = vrot.lane.b32.xlu0 %v1145, 40
    %v1150 = vpop.permute.xlu0 %1149
    %1151 = vrot.lane.b32.xlu0 %v1146, 40
    %v1152 = vpop.permute.xlu0 %1151
    %vm1155 = vcmask 392512
    %1156 = vst.msk [vmem:[#allocation2] sm:$0xff] %vm1155, %v1150
    %1157 = vst.msk [vmem:[#allocation2 + $0x8] sm:$0xff] %vm1155, %v1152
    // Predicated region
    $region30: #{tpu_custom_call.1} parent=1 // pred_check
      _
    $region31: #{tpu_custom_call.1} parent=1 // pred_check_branch
      %1159 = sbr.rel (0) target = $region33
    $region32: #{tpu_custom_call.1} parent=1 // pred_region
      %s1161 = ssub.s32 256, 256
      %1162 = vsyncadd [#allocation3], %s1161
      %s1163 = sshll.u32 [#allocation2], 4
      %s1164 = int_to_ptr.vmem [resolvable:$true] %s1163
      %1169 = dma.vmem_to_hbm [thread:$0]  %s1164, 256, %s7, [#allocation3], 128, 128, 8
    $region33: #{tpu_custom_call.1} parent=1 // pred_fallthru
      _
    // Predicated region
    $region34: #{tpu_custom_call.1} parent=1 // pred_check
      _
    $region35: #{tpu_custom_call.1} parent=1 // pred_check_branch
      %1171 = sbr.rel (0) target = $region37
    $region36: #{tpu_custom_call.1} parent=1 // pred_region
      %1172 = dma.done [#allocation3], 256
    $region37: #{tpu_custom_call.1} parent=1 // pred_fallthru
      _
    %1173 = vsyncpa [#allocation3], 1

</llo_original>
